<compile_context>
chip_gen: v7x
topology: tpu7x:2x2x1
jax: 0.10.0
libtpu: 0.0.40
codegen_flags: <defaults>
</compile_context>

<pallas_src>
import functools

import jax
import jax.numpy as jnp
from jax import lax
from jax.experimental import pallas as pl
from jax.experimental.pallas import tpu as pltpu


def _round_up(a, b):
    return ((a + b - 1) // b) * b


def _onehot(cond, dtype):
    return jnp.where(cond, 1.0, 0.0).astype(dtype)


def _mha_kernel(N, H, D, mxu_dtype,
                x_ref, wqkv_ref, bqkv_ref, we_ref, be_ref,
                ea_ref, src_ref, dst_ref, dstrow_ref, hsum_ref, hexp_ref,
                out_ref, eout_ref,
                q_sc, kv_sc, acc_sc):
    f32 = jnp.float32
    HD = H * D
    TE = ea_ref.shape[0]
    t = pl.program_id(0)
    nt = pl.num_programs(0)

    # ---- grid step 0: fused QKV projection + accumulator init ----
    @pl.when(t == 0)
    def _init():
        xm = x_ref[...].astype(mxu_dtype)
        wm = wqkv_ref[...].astype(mxu_dtype)
        qkv = jnp.dot(xm, wm, preferred_element_type=f32) + bqkv_ref[...]
        q_sc[...] = qkv[:, 0:HD]
        kv_sc[...] = qkv[:, HD:3 * HD]          # [K | V] — contiguous slice
        acc_sc[...] = jnp.zeros_like(acc_sc)    # [num | z] accumulator

    # ---- per-edge-tile work ----
    src = src_ref[...]          # [TE, 1] int32 (padded edges use id == N)
    dst = dst_ref[...]          # [TE, 1] int32
    dst_row = dstrow_ref[...]   # [1, TE] int32 (same dst ids, lane-major)

    lane_node = lax.broadcasted_iota(jnp.int32, (TE, N), 1)
    gsrc = _onehot(lane_node == src, mxu_dtype)        # [TE, N] gather by src
    gdst = _onehot(lane_node == dst, mxu_dtype)        # [TE, N] gather by dst
    sub_node = lax.broadcasted_iota(jnp.int32, (N, TE), 0)
    sdst = _onehot(sub_node == dst_row, mxu_dtype)     # [N, TE] scatter-add to dst

    # Fused gather of K and V by src (one MXU pass), Q by dst.
    KV_j = jnp.dot(gsrc, kv_sc[...].astype(mxu_dtype),
                   preferred_element_type=f32)                        # [TE, 2*HD]
    K_j = KV_j[:, :HD]
    V_j = KV_j[:, HD:]
    Q_i = jnp.dot(gdst, q_sc[...].astype(mxu_dtype),
                  preferred_element_type=f32)                         # [TE, HD]

    Ep = jnp.dot(ea_ref[...].astype(mxu_dtype), we_ref[...].astype(mxu_dtype),
                 preferred_element_type=f32) + be_ref[...]            # [TE, HD]

    # score[e, h] = sum_d Q_i*K_j*Ep / sqrt(d)   (scale folded into hsum)
    prod = Q_i * K_j * Ep                                             # f32, VPU
    score = jnp.dot(prod.astype(mxu_dtype), hsum_ref[...].astype(mxu_dtype),
                    preferred_element_type=f32)                       # [TE, H]
    eout_ref[...] = score

    sc = jnp.exp(jnp.clip(score, -5.0, 5.0))                          # [TE, H] f32
    # Broadcast each head's weight across that head's D features via matmul.
    sc_full = jnp.dot(sc.astype(mxu_dtype), hexp_ref[...].astype(mxu_dtype),
                      preferred_element_type=f32)                     # [TE, HD]
    msg = V_j * sc_full                                               # [TE, HD]

    # Single fused scatter-add into the per-node accumulator (msg lanes first,
    # then the H z-lanes); normalization deferred to the last tile.
    payload = jnp.concatenate([msg, sc], axis=1)                      # [TE, HD+H]
    acc_sc[...] = acc_sc[...] + jnp.dot(sdst, payload.astype(mxu_dtype),
                                        preferred_element_type=f32)   # [N, HD+H]

    # ---- last tile: normalize and emit node output ----
    @pl.when(t == nt - 1)
    def _finalize():
        acc = acc_sc[...]
        num = acc[:, :HD]                                             # [N, HD]
        z = acc[:, HD:]                                               # [N, H]
        z_full = jnp.dot(z.astype(mxu_dtype), hexp_ref[...].astype(mxu_dtype),
                         preferred_element_type=f32)                  # [N, HD]
        out_ref[...] = num / (z_full + 1e-6)


def multi_head_attention_pallas(x, edge_index, edge_attr, params,
                                num_heads, out_dim_per_head,
                                *, edge_tile=512, matmul_dtype=jnp.bfloat16):
    f32 = jnp.float32
    N, in_dim = x.shape
    E = edge_index.shape[1]
    edge_dim = edge_attr.shape[1]
    H, D = num_heads, out_dim_per_head
    HD = H * D

    # Edge tile: multiple of 128 (lane-aligned dst row, sublane-aligned tiles).
    TE = _round_up(max(int(edge_tile), 128), 128)
    E_pad = _round_up(max(E, 1), TE)
    pad_e = E_pad - E

    src = edge_index[0].astype(jnp.int32)
    dst = edge_index[1].astype(jnp.int32)
    # Pad with out-of-range node id N: padded edges gather zeros & scatter nowhere.
    pad_ids = jnp.full((pad_e,), N, dtype=jnp.int32)
    src_p = jnp.concatenate([src, pad_ids])
    dst_p = jnp.concatenate([dst, pad_ids])
    src_col = src_p.reshape(E_pad, 1)
    dst_col = dst_p.reshape(E_pad, 1)
    dst_row = dst_p.reshape(1, E_pad)
    ea_p = jnp.pad(edge_attr.astype(f32), ((0, pad_e), (0, 0)))

    # Fused QKV weights; 1/sqrt(d) folded into the per-head summing matrix.
    wqkv = jnp.concatenate([params["Wq"], params["Wk"], params["Wv"]], axis=1)
    bqkv = jnp.concatenate([params["bq"], params["bk"], params["bv"]], axis=1)
    head_blocks = jnp.repeat(jnp.eye(H, dtype=f32), D, axis=0)        # [HD, H] 0/1
    hsum = head_blocks * (1.0 / (D ** 0.5))                           # [HD, H]
    hexp = head_blocks.T                                              # [H, HD]

    grid = (E_pad // TE,)
    kernel = functools.partial(_mha_kernel, N, H, D, matmul_dtype)

    def _full(shape):
        return pl.BlockSpec(shape, lambda t: (0, 0))

    out, e_out = pl.pallas_call(
        kernel,
        out_shape=(jax.ShapeDtypeStruct((N, HD), f32),
                   jax.ShapeDtypeStruct((E_pad, H), f32)),
        grid=grid,
        in_specs=[
            _full((N, in_dim)),                                # x
            _full((in_dim, 3 * HD)),                           # Wqkv (fused)
            _full((1, 3 * HD)),                                # bqkv (fused)
            _full((edge_dim, HD)),                             # We
            _full((1, HD)),                                    # be
            pl.BlockSpec((TE, edge_dim), lambda t: (t, 0)),    # edge_attr tile
            pl.BlockSpec((TE, 1), lambda t: (t, 0)),           # src (column layout)
            pl.BlockSpec((TE, 1), lambda t: (t, 0)),           # dst (column layout)
            pl.BlockSpec((1, TE), lambda t: (0, t)),           # dst (row layout, scatter)
            _full((HD, H)),                                    # hsum (scale folded)
            _full((H, HD)),                                    # hexp
        ],
        out_specs=(
            pl.BlockSpec((N, HD), lambda t: (0, 0)),           # out (VMEM-resident)
            pl.BlockSpec((TE, H), lambda t: (t, 0)),           # e_out tile
        ),
        scratch_shapes=[
            pltpu.VMEM((N, HD), f32),          # Q
            pltpu.VMEM((N, 2 * HD), f32),      # [K | V]
            pltpu.VMEM((N, HD + H), f32),      # [message-sum | z] accumulator
        ],
        compiler_params=pltpu.CompilerParams(
            dimension_semantics=("arbitrary",),
            vmem_limit_bytes=32 * 1024 * 1024,
        ),
    )(x.astype(f32), wqkv.astype(f32), bqkv.astype(f32),
      params["We"].astype(f32), params["be"].astype(f32),
      ea_p, src_col, dst_col, dst_row, hsum, hexp)

    return out, e_out[:E]


def reference_jax(x, edge_index, edge_attr, params, num_heads, out_dim_per_head):
    """Pure-JAX reference mirroring the PyTorch forward (full f32 precision)."""
    N = x.shape[0]
    H, D = num_heads, out_dim_per_head
    HD = H * D
    hp = jax.lax.Precision.HIGHEST
    Q = (jnp.dot(x, params["Wq"], precision=hp) + params["bq"]).reshape(N, H, D)
    K = (jnp.dot(x, params["Wk"], precision=hp) + params["bk"]).reshape(N, H, D)
    V = (jnp.dot(x, params["Wv"], precision=hp) + params["bv"]).reshape(N, H, D)
    Ep = (jnp.dot(edge_attr, params["We"], precision=hp) + params["be"]).reshape(-1, H, D)
    src, dst = edge_index[0], edge_index[1]
    K_j, Q_i, V_j = K[src], Q[dst], V[src]
    score = (Q_i * K_j / (D ** 0.5) * Ep).sum(-1)       # [E, H]
    e_out = score
    sc = jnp.exp(jnp.clip(score, -5.0, 5.0))
    z = jax.ops.segment_sum(sc, dst, num_segments=N)
    alpha = sc / (z[dst] + 1e-6)
    msg = V_j * alpha[..., None]
    out = jax.ops.segment_sum(msg, dst, num_segments=N).reshape(N, HD)
    return out, e_out


if __name__ == "__main__":
    N = 24            # num nodes
    E = 200           # num edges (padded to 256 -> 2 edge tiles of 128)
    in_dim = 16
    edge_dim = 8
    num_heads = 4
    out_dim_per_head = 8
    HD = num_heads * out_dim_per_head

    key = jax.random.PRNGKey(0)
    ks = jax.random.split(key, 12)
    f32 = jnp.float32

    x = jax.random.normal(ks[0], (N, in_dim), dtype=f32)
    edge_attr = jax.random.normal(ks[1], (E, edge_dim), dtype=f32)
    edge_src = jax.random.randint(ks[2], (E,), 0, N, dtype=jnp.int32)
    edge_dst = jax.random.randint(ks[3], (E,), 0, N, dtype=jnp.int32)
    edge_index = jnp.stack([edge_src, edge_dst], axis=0)   # [2, E]

    def init_w(k, fan_in, fan_out):
        return jax.random.normal(k, (fan_in, fan_out), dtype=f32) * (1.0 / (fan_in ** 0.5))

    params = {
        "Wq": init_w(ks[4], in_dim, HD),
        "Wk": init_w(ks[5], in_dim, HD),
        "Wv": init_w(ks[6], in_dim, HD),
        "We": init_w(ks[7], edge_dim, HD),
        "bq": jax.random.normal(ks[8], (1, HD), dtype=f32) * 0.1,
        "bk": jax.random.normal(ks[9], (1, HD), dtype=f32) * 0.1,
        "bv": jax.random.normal(ks[10], (1, HD), dtype=f32) * 0.1,
        "be": jax.random.normal(ks[11], (1, HD), dtype=f32) * 0.1,
    }

    out_ref_, e_out_ref_ = reference_jax(
        x, edge_index, edge_attr, params, num_heads, out_dim_per_head)

    # f32 MXU path: matches the f32 reference tightly.
    out, e_out = multi_head_attention_pallas(
        x, edge_index, edge_attr, params, num_heads, out_dim_per_head,
        edge_tile=128, matmul_dtype=jnp.float32)
    out = jax.block_until_ready(out)
    e_out = jax.block_until_ready(e_out)

    assert out.shape == (N, HD) and e_out.shape == (E, num_heads)
    assert jnp.allclose(out, out_ref_, atol=1e-4, rtol=1e-4), "node output mismatch (f32)"
    assert jnp.allclose(e_out, e_out_ref_, atol=1e-4, rtol=1e-4), "edge output mismatch (f32)"

    # bf16-MXU path: same structure, bf16 matmul operands, f32 elementwise /
    # softmax math -> looser tolerance vs the f32 reference.
    out_bf, e_out_bf = multi_head_attention_pallas(
        x, edge_index, edge_attr, params, num_heads, out_dim_per_head,
        edge_tile=128, matmul_dtype=jnp.bfloat16)
    out_bf = jax.block_until_ready(out_bf)
    e_out_bf = jax.block_until_ready(e_out_bf)
    assert jnp.allclose(out_bf, out_ref_, atol=1e-1, rtol=1e-1), "node output mismatch (bf16)"
    assert jnp.allclose(e_out_bf, e_out_ref_, atol=1e-1, rtol=1e-1), "edge output mismatch (bf16)"

    print("KERNEL_OK")
</pallas_src>

<mosaic_0001>
module attributes {stable_mosaic.version = 11 : i64} {
  func.func @_mha_kernel(%arg0: i32, %arg1: memref<24x16xf32, #tpu.memory_space<vmem>>, %arg2: memref<16x96xf32, #tpu.memory_space<vmem>>, %arg3: memref<1x96xf32, #tpu.memory_space<vmem>>, %arg4: memref<8x32xf32, #tpu.memory_space<vmem>>, %arg5: memref<1x32xf32, #tpu.memory_space<vmem>>, %arg6: memref<128x8xf32, #tpu.memory_space<vmem>>, %arg7: memref<128x1xi32, #tpu.memory_space<vmem>>, %arg8: memref<128x1xi32, #tpu.memory_space<vmem>>, %arg9: memref<1x128xi32, #tpu.memory_space<vmem>>, %arg10: memref<32x4xf32, #tpu.memory_space<vmem>>, %arg11: memref<4x32xf32, #tpu.memory_space<vmem>>, %arg12: memref<24x32xf32, #tpu.memory_space<vmem>>, %arg13: memref<128x4xf32, #tpu.memory_space<vmem>>, %arg14: memref<24x32xf32, #tpu.memory_space<vmem>>, %arg15: memref<24x64xf32, #tpu.memory_space<vmem>>, %arg16: memref<24x36xf32, #tpu.memory_space<vmem>>) attributes {dimension_semantics = [#tpu.dimension_semantics<arbitrary>], iteration_bounds = array<i64: 2>, scalar_prefetch = 0 : i64, scratch_operands = 3 : i64, tpu.core_type = #tpu.core_type<tc>, window_params = [{pipeline_mode = #tpu.pipeline_mode<synchronous>, transform_indices = @transform_0, window_bounds = array<i64: 24, 16>}, {pipeline_mode = #tpu.pipeline_mode<synchronous>, transform_indices = @transform_1, window_bounds = array<i64: 16, 96>}, {pipeline_mode = #tpu.pipeline_mode<synchronous>, transform_indices = @transform_2, window_bounds = array<i64: 1, 96>}, {pipeline_mode = #tpu.pipeline_mode<synchronous>, transform_indices = @transform_3, window_bounds = array<i64: 8, 32>}, {pipeline_mode = #tpu.pipeline_mode<synchronous>, transform_indices = @transform_4, window_bounds = array<i64: 1, 32>}, {transform_indices = @transform_5, window_bounds = array<i64: 128, 8>}, {transform_indices = @transform_6, window_bounds = array<i64: 128, 1>}, {transform_indices = @transform_7, window_bounds = array<i64: 128, 1>}, {transform_indices = @transform_8, window_bounds = array<i64: 1, 128>}, {pipeline_mode = #tpu.pipeline_mode<synchronous>, transform_indices = @transform_9, window_bounds = array<i64: 32, 4>}, {pipeline_mode = #tpu.pipeline_mode<synchronous>, transform_indices = @transform_10, window_bounds = array<i64: 4, 32>}, {pipeline_mode = #tpu.pipeline_mode<synchronous>, transform_indices = @transform_11, window_bounds = array<i64: 24, 32>}, {transform_indices = @transform_12, window_bounds = array<i64: 128, 4>}]} {
    %c0_i32 = arith.constant 0 : i32
    %0 = arith.cmpi eq, %arg0, %c0_i32 : i32
    %1 = arith.extui %0 : i1 to i32
    %c0_i32_0 = arith.constant 0 : i32
    %2 = arith.cmpi ne, %1, %c0_i32_0 : i32
    scf.if %2 {
      %c0_40 = arith.constant 0 : index
      %c0_41 = arith.constant 0 : index
      %56 = vector.load %arg1[%c0_40, %c0_41] : memref<24x16xf32, #tpu.memory_space<vmem>>, vector<24x16xf32>
      %c0_42 = arith.constant 0 : index
      %c0_43 = arith.constant 0 : index
      %57 = vector.load %arg2[%c0_42, %c0_43] : memref<16x96xf32, #tpu.memory_space<vmem>>, vector<16x96xf32>
      %cst_44 = arith.constant dense<0.000000e+00> : vector<24x96xf32>
      %58 = tpu.matmul %56, %57, %cst_44 {dimension_numbers = #tpu.dot_dimension_numbers<[1], [0], [0], [1], [0, 0, 1, 1], [], []>} : vector<24x16xf32>, vector<16x96xf32>, vector<24x96xf32> -> vector<24x96xf32>
      %c0_45 = arith.constant 0 : index
      %c0_46 = arith.constant 0 : index
      %59 = vector.load %arg3[%c0_45, %c0_46] : memref<1x96xf32, #tpu.memory_space<vmem>>, vector<1x96xf32>
      %60 = vector.broadcast %59 : vector<1x96xf32> to vector<24x96xf32>
      %61 = arith.addf %58, %60 : vector<24x96xf32>
      %62 = vector.extract_strided_slice %61 {offsets = [0, 0], sizes = [24, 32], strides = [1, 1]} : vector<24x96xf32> to vector<24x32xf32>
      %c0_47 = arith.constant 0 : index
      %c0_48 = arith.constant 0 : index
      %63 = vector.load %arg14[%c0_47, %c0_48] : memref<24x32xf32, #tpu.memory_space<vmem>>, vector<24x32xf32>
      tpu.vector_store %arg14[%c0_47, %c0_48], %62 {strides = array<i32>} : memref<24x32xf32, #tpu.memory_space<vmem>>, vector<24x32xf32>,
      %64 = vector.extract_strided_slice %61 {offsets = [0, 32], sizes = [24, 64], strides = [1, 1]} : vector<24x96xf32> to vector<24x64xf32>
      %c0_49 = arith.constant 0 : index
      %c0_50 = arith.constant 0 : index
      %65 = vector.load %arg15[%c0_49, %c0_50] : memref<24x64xf32, #tpu.memory_space<vmem>>, vector<24x64xf32>
      tpu.vector_store %arg15[%c0_49, %c0_50], %64 {strides = array<i32>} : memref<24x64xf32, #tpu.memory_space<vmem>>, vector<24x64xf32>,
      %cst_51 = arith.constant 0.000000e+00 : f32
      %66 = vector.broadcast %cst_51 : f32 to vector<24x36xf32>
      %c0_52 = arith.constant 0 : index
      %c0_53 = arith.constant 0 : index
      %67 = vector.load %arg16[%c0_52, %c0_53] : memref<24x36xf32, #tpu.memory_space<vmem>>, vector<24x36xf32>
      tpu.vector_store %arg16[%c0_52, %c0_53], %66 {strides = array<i32>} : memref<24x36xf32, #tpu.memory_space<vmem>>, vector<24x36xf32>,
    } else {
    }
    %c0 = arith.constant 0 : index
    %c0_1 = arith.constant 0 : index
    %3 = vector.load %arg7[%c0, %c0_1] : memref<128x1xi32, #tpu.memory_space<vmem>>, vector<128x1xi32>
    %c0_2 = arith.constant 0 : index
    %c0_3 = arith.constant 0 : index
    %4 = vector.load %arg8[%c0_2, %c0_3] : memref<128x1xi32, #tpu.memory_space<vmem>>, vector<128x1xi32>
    %c0_4 = arith.constant 0 : index
    %c0_5 = arith.constant 0 : index
    %5 = vector.load %arg9[%c0_4, %c0_5] : memref<1x128xi32, #tpu.memory_space<vmem>>, vector<1x128xi32>
    %6 = tpu.iota {dimensions = array<i32: 1>} : vector<128x24xi32>
    %7 = vector.broadcast %3 : vector<128x1xi32> to vector<128x24xi32>
    %8 = arith.cmpi eq, %6, %7 : vector<128x24xi32>
    %cst = arith.constant 1.000000e+00 : f32
    %cst_6 = arith.constant 0.000000e+00 : f32
    %9 = vector.broadcast %cst : f32 to vector<128x24xf32>
    %10 = vector.broadcast %cst_6 : f32 to vector<128x24xf32>
    %11 = arith.select %8, %9, %10 : vector<128x24xi1>, vector<128x24xf32>
    %12 = vector.broadcast %4 : vector<128x1xi32> to vector<128x24xi32>
    %13 = arith.cmpi eq, %6, %12 : vector<128x24xi32>
    %cst_7 = arith.constant 1.000000e+00 : f32
    %cst_8 = arith.constant 0.000000e+00 : f32
    %14 = vector.broadcast %cst_7 : f32 to vector<128x24xf32>
    %15 = vector.broadcast %cst_8 : f32 to vector<128x24xf32>
    %16 = arith.select %13, %14, %15 : vector<128x24xi1>, vector<128x24xf32>
    %17 = tpu.iota {dimensions = array<i32: 0>} : vector<24x128xi32>
    %18 = vector.broadcast %5 : vector<1x128xi32> to vector<24x128xi32>
    %19 = arith.cmpi eq, %17, %18 : vector<24x128xi32>
    %cst_9 = arith.constant 1.000000e+00 : f32
    %cst_10 = arith.constant 0.000000e+00 : f32
    %20 = vector.broadcast %cst_9 : f32 to vector<24x128xf32>
    %21 = vector.broadcast %cst_10 : f32 to vector<24x128xf32>
    %22 = arith.select %19, %20, %21 : vector<24x128xi1>, vector<24x128xf32>
    %c0_11 = arith.constant 0 : index
    %c0_12 = arith.constant 0 : index
    %23 = vector.load %arg15[%c0_11, %c0_12] : memref<24x64xf32, #tpu.memory_space<vmem>>, vector<24x64xf32>
    %cst_13 = arith.constant dense<0.000000e+00> : vector<128x64xf32>
    %24 = tpu.matmul %11, %23, %cst_13 {dimension_numbers = #tpu.dot_dimension_numbers<[1], [0], [0], [1], [0, 0, 1, 1], [], []>} : vector<128x24xf32>, vector<24x64xf32>, vector<128x64xf32> -> vector<128x64xf32>
    %25 = vector.extract_strided_slice %24 {offsets = [0, 0], sizes = [128, 32], strides = [1, 1]} : vector<128x64xf32> to vector<128x32xf32>
    %26 = vector.extract_strided_slice %24 {offsets = [0, 32], sizes = [128, 32], strides = [1, 1]} : vector<128x64xf32> to vector<128x32xf32>
    %c0_14 = arith.constant 0 : index
    %c0_15 = arith.constant 0 : index
    %27 = vector.load %arg14[%c0_14, %c0_15] : memref<24x32xf32, #tpu.memory_space<vmem>>, vector<24x32xf32>
    %cst_16 = arith.constant dense<0.000000e+00> : vector<128x32xf32>
    %28 = tpu.matmul %16, %27, %cst_16 {dimension_numbers = #tpu.dot_dimension_numbers<[1], [0], [0], [1], [0, 0, 1, 1], [], []>} : vector<128x24xf32>, vector<24x32xf32>, vector<128x32xf32> -> vector<128x32xf32>
    %c0_17 = arith.constant 0 : index
    %c0_18 = arith.constant 0 : index
    %29 = vector.load %arg6[%c0_17, %c0_18] : memref<128x8xf32, #tpu.memory_space<vmem>>, vector<128x8xf32>
    %c0_19 = arith.constant 0 : index
    %c0_20 = arith.constant 0 : index
    %30 = vector.load %arg4[%c0_19, %c0_20] : memref<8x32xf32, #tpu.memory_space<vmem>>, vector<8x32xf32>
    %cst_21 = arith.constant dense<0.000000e+00> : vector<128x32xf32>
    %31 = tpu.matmul %29, %30, %cst_21 {dimension_numbers = #tpu.dot_dimension_numbers<[1], [0], [0], [1], [0, 0, 1, 1], [], []>} : vector<128x8xf32>, vector<8x32xf32>, vector<128x32xf32> -> vector<128x32xf32>
    %c0_22 = arith.constant 0 : index
    %c0_23 = arith.constant 0 : index
    %32 = vector.load %arg5[%c0_22, %c0_23] : memref<1x32xf32, #tpu.memory_space<vmem>>, vector<1x32xf32>
    %33 = vector.broadcast %32 : vector<1x32xf32> to vector<128x32xf32>
    %34 = arith.addf %31, %33 : vector<128x32xf32>
    %35 = arith.mulf %28, %25 : vector<128x32xf32>
    %36 = arith.mulf %35, %34 : vector<128x32xf32>
    %c0_24 = arith.constant 0 : index
    %c0_25 = arith.constant 0 : index
    %37 = vector.load %arg10[%c0_24, %c0_25] : memref<32x4xf32, #tpu.memory_space<vmem>>, vector<32x4xf32>
    %cst_26 = arith.constant dense<0.000000e+00> : vector<128x4xf32>
    %38 = tpu.matmul %36, %37, %cst_26 {dimension_numbers = #tpu.dot_dimension_numbers<[1], [0], [0], [1], [0, 0, 1, 1], [], []>} : vector<128x32xf32>, vector<32x4xf32>, vector<128x4xf32> -> vector<128x4xf32>
    %c0_27 = arith.constant 0 : index
    %c0_28 = arith.constant 0 : index
    %39 = vector.load %arg13[%c0_27, %c0_28] : memref<128x4xf32, #tpu.memory_space<vmem>>, vector<128x4xf32>
    tpu.vector_store %arg13[%c0_27, %c0_28], %38 {strides = array<i32>} : memref<128x4xf32, #tpu.memory_space<vmem>>, vector<128x4xf32>,
    %cst_29 = arith.constant -5.000000e+00 : f32
    %cst_30 = arith.constant 5.000000e+00 : f32
    %40 = vector.broadcast %cst_29 : f32 to vector<128x4xf32>
    %41 = arith.maximumf %40, %38 : vector<128x4xf32>
    %42 = vector.broadcast %cst_30 : f32 to vector<128x4xf32>
    %43 = arith.minimumf %42, %41 : vector<128x4xf32>
    %44 = math.exp %43 : vector<128x4xf32>
    %c0_31 = arith.constant 0 : index
    %c0_32 = arith.constant 0 : index
    %45 = vector.load %arg11[%c0_31, %c0_32] : memref<4x32xf32, #tpu.memory_space<vmem>>, vector<4x32xf32>
    %cst_33 = arith.constant dense<0.000000e+00> : vector<128x32xf32>
    %46 = tpu.matmul %44, %45, %cst_33 {dimension_numbers = #tpu.dot_dimension_numbers<[1], [0], [0], [1], [0, 0, 1, 1], [], []>} : vector<128x4xf32>, vector<4x32xf32>, vector<128x32xf32> -> vector<128x32xf32>
    %47 = arith.mulf %26, %46 : vector<128x32xf32>
    %48 = tpu.concatenate %47, %44 in 1 : vector<128x32xf32>, vector<128x4xf32> -> vector<128x36xf32>
    %c0_34 = arith.constant 0 : index
    %c0_35 = arith.constant 0 : index
    %49 = vector.load %arg16[%c0_34, %c0_35] : memref<24x36xf32, #tpu.memory_space<vmem>>, vector<24x36xf32>
    %cst_36 = arith.constant dense<0.000000e+00> : vector<24x36xf32>
    %50 = tpu.matmul %22, %48, %cst_36 {dimension_numbers = #tpu.dot_dimension_numbers<[1], [0], [0], [1], [0, 0, 1, 1], [], []>} : vector<24x128xf32>, vector<128x36xf32>, vector<24x36xf32> -> vector<24x36xf32>
    %51 = arith.addf %49, %50 : vector<24x36xf32>
    %c0_37 = arith.constant 0 : index
    %c0_38 = arith.constant 0 : index
    %52 = vector.load %arg16[%c0_37, %c0_38] : memref<24x36xf32, #tpu.memory_space<vmem>>, vector<24x36xf32>
    tpu.vector_store %arg16[%c0_37, %c0_38], %51 {strides = array<i32>} : memref<24x36xf32, #tpu.memory_space<vmem>>, vector<24x36xf32>,
    %c1_i32 = arith.constant 1 : i32
    %53 = arith.cmpi eq, %arg0, %c1_i32 : i32
    %54 = arith.extui %53 : i1 to i32
    %c0_i32_39 = arith.constant 0 : i32
    %55 = arith.cmpi ne, %54, %c0_i32_39 : i32
    scf.if %55 {
      %c0_40 = arith.constant 0 : index
      %c0_41 = arith.constant 0 : index
      %56 = vector.load %arg16[%c0_40, %c0_41] : memref<24x36xf32, #tpu.memory_space<vmem>>, vector<24x36xf32>
      %57 = vector.extract_strided_slice %56 {offsets = [0, 0], sizes = [24, 32], strides = [1, 1]} : vector<24x36xf32> to vector<24x32xf32>
      %58 = vector.extract_strided_slice %56 {offsets = [0, 32], sizes = [24, 4], strides = [1, 1]} : vector<24x36xf32> to vector<24x4xf32>
      %c0_42 = arith.constant 0 : index
      %c0_43 = arith.constant 0 : index
      %59 = vector.load %arg11[%c0_42, %c0_43] : memref<4x32xf32, #tpu.memory_space<vmem>>, vector<4x32xf32>
      %cst_44 = arith.constant dense<0.000000e+00> : vector<24x32xf32>
      %60 = tpu.matmul %58, %59, %cst_44 {dimension_numbers = #tpu.dot_dimension_numbers<[1], [0], [0], [1], [0, 0, 1, 1], [], []>} : vector<24x4xf32>, vector<4x32xf32>, vector<24x32xf32> -> vector<24x32xf32>
      %cst_45 = arith.constant 9.99999997E-7 : f32
      %61 = vector.broadcast %cst_45 : f32 to vector<24x32xf32>
      %62 = arith.addf %60, %61 : vector<24x32xf32>
      %63 = arith.divf %57, %62 : vector<24x32xf32>
      %c0_46 = arith.constant 0 : index
      %c0_47 = arith.constant 0 : index
      %64 = vector.load %arg12[%c0_46, %c0_47] : memref<24x32xf32, #tpu.memory_space<vmem>>, vector<24x32xf32>
      tpu.vector_store %arg12[%c0_46, %c0_47], %63 {strides = array<i32>} : memref<24x32xf32, #tpu.memory_space<vmem>>, vector<24x32xf32>,
    } else {
    }
    return
  }
  func.func @transform_0(%arg0: i32) -> (i32, i32) {
    %c0_i32 = arith.constant 0 : i32
    %c0_i32_0 = arith.constant 0 : i32
    %c0_i32_1 = arith.constant 0 : i32
    return %c0_i32, %c0_i32_0 : i32, i32
  }
  func.func @transform_1(%arg0: i32) -> (i32, i32) {
    %c0_i32 = arith.constant 0 : i32
    %c0_i32_0 = arith.constant 0 : i32
    %c0_i32_1 = arith.constant 0 : i32
    return %c0_i32, %c0_i32_0 : i32, i32
  }
  func.func @transform_2(%arg0: i32) -> (i32, i32) {
    %c0_i32 = arith.constant 0 : i32
    %c0_i32_0 = arith.constant 0 : i32
    %c0_i32_1 = arith.constant 0 : i32
    return %c0_i32, %c0_i32_0 : i32, i32
  }
  func.func @transform_3(%arg0: i32) -> (i32, i32) {
    %c0_i32 = arith.constant 0 : i32
    %c0_i32_0 = arith.constant 0 : i32
    %c0_i32_1 = arith.constant 0 : i32
    return %c0_i32, %c0_i32_0 : i32, i32
  }
  func.func @transform_4(%arg0: i32) -> (i32, i32) {
    %c0_i32 = arith.constant 0 : i32
    %c0_i32_0 = arith.constant 0 : i32
    %c0_i32_1 = arith.constant 0 : i32
    return %c0_i32, %c0_i32_0 : i32, i32
  }
  func.func @transform_5(%arg0: i32) -> (i32, i32) {
    %c0_i32 = arith.constant 0 : i32
    %c0_i32_0 = arith.constant 0 : i32
    return %arg0, %c0_i32 : i32, i32
  }
  func.func @transform_6(%arg0: i32) -> (i32, i32) {
    %c0_i32 = arith.constant 0 : i32
    %c0_i32_0 = arith.constant 0 : i32
    return %arg0, %c0_i32 : i32, i32
  }
  func.func @transform_7(%arg0: i32) -> (i32, i32) {
    %c0_i32 = arith.constant 0 : i32
    %c0_i32_0 = arith.constant 0 : i32
    return %arg0, %c0_i32 : i32, i32
  }
  func.func @transform_8(%arg0: i32) -> (i32, i32) {
    %c0_i32 = arith.constant 0 : i32
    %c0_i32_0 = arith.constant 0 : i32
    return %c0_i32, %arg0 : i32, i32
  }
  func.func @transform_9(%arg0: i32) -> (i32, i32) {
    %c0_i32 = arith.constant 0 : i32
    %c0_i32_0 = arith.constant 0 : i32
    %c0_i32_1 = arith.constant 0 : i32
    return %c0_i32, %c0_i32_0 : i32, i32
  }
  func.func @transform_10(%arg0: i32) -> (i32, i32) {
    %c0_i32 = arith.constant 0 : i32
    %c0_i32_0 = arith.constant 0 : i32
    %c0_i32_1 = arith.constant 0 : i32
    return %c0_i32, %c0_i32_0 : i32, i32
  }
  func.func @transform_11(%arg0: i32) -> (i32, i32) {
    %c0_i32 = arith.constant 0 : i32
    %c0_i32_0 = arith.constant 0 : i32
    %c0_i32_1 = arith.constant 0 : i32
    return %c0_i32, %c0_i32_0 : i32, i32
  }
  func.func @transform_12(%arg0: i32) -> (i32, i32) {
    %c0_i32 = arith.constant 0 : i32
    %c0_i32_0 = arith.constant 0 : i32
    return %arg0, %c0_i32 : i32, i32
  }
}

</mosaic_0001>

<llo_original>
// kernel: tpu_custom_call.1
$region0: #{tpu_custom_call.1}
  #allocation0 [shape = 'u32[]', space=smem, size = 0x4, offset = 0x4, fixed_abs, tag = 'smem constant byte address 0x4 - core index']
  #allocation1 [shape = 'u32[144,128]{1,0:T(1,128)}', space=vmem, size = 0x12000, scoped, tag = 'internal scratch']
  #allocation2 [shape = 'f32[24,32]{1,0:T(8,128)}', space=vmem, size = 0x3000, scoped, tag = 'scratch operand']
  #allocation3 [shape = 'f32[24,64]{1,0:T(8,128)}', space=vmem, size = 0x3000, scoped, tag = 'scratch operand']
  #allocation4 [shape = 'f32[24,36]{1,0:T(8,128)}', space=vmem, size = 0x3000, scoped, tag = 'scratch operand']
  %s0 = inlined_call_operand.vmem [shape: f32[24,16], index: 0, kind: input, shape index: {}]
  %s1 = inlined_call_operand.vmem [shape: f32[16,96], index: 1, kind: input, shape index: {}]
  %s2 = inlined_call_operand.vmem [shape: f32[1,96], index: 2, kind: input, shape index: {}]
  %s3 = inlined_call_operand.vmem [shape: f32[8,32], index: 3, kind: input, shape index: {}]
  %s4 = inlined_call_operand.vmem [shape: f32[1,32], index: 4, kind: input, shape index: {}]
  %s5 = inlined_call_operand.vmem [shape: f32[256,8], index: 5, kind: input, shape index: {}]
  %s6 = inlined_call_operand.vmem [shape: s32[256,1], index: 6, kind: input, shape index: {}]
  %s7 = inlined_call_operand.vmem [shape: s32[256,1], index: 7, kind: input, shape index: {}]
  %s8 = inlined_call_operand.vmem [shape: s32[1,256], index: 8, kind: input, shape index: {}]
  %s9 = inlined_call_operand.vmem [shape: f32[32,4], index: 9, kind: input, shape index: {}]
  %s10 = inlined_call_operand.vmem [shape: f32[4,32], index: 10, kind: input, shape index: {}]
  %s11 = inlined_call_operand.hbm [shape: f32[24,32], index: 11, kind: output, shape index: {0}]
  %s12 = inlined_call_operand.vmem [shape: f32[256,4], index: 12, kind: output, shape index: {1}]
  %13 = xla_tuple %s11, %s12
  %s14 = sld [smem:[#allocation0]]
  $region93: #{tpu_custom_call.1} parent=0
    _
  %s16 = ssub.s32 1, %s14
  %s17 = scalar_select 0, %s16, %s14
  $region1: #{tpu_custom_call.1} parent=0
    #allocation5 [shape = 'u8[12288]{0}', space=vmem, size = 0x3000, scoped, tag = 'output window, operand 0, single buffered']
    #allocation6 [shape = 's32[2]{0}', space=sflag, size = 0x8, scoped, tag = 'scoped memory for tpu_custom_call.1']
    %18 = vsyncpa [#allocation6], 0
    loop: start=0, step=1, limit=4
    $region2: #{tpu_custom_call.1} parent=1 // loop_pre_header
      _
    $region3: #{tpu_custom_call.1} parent=1 // loop_header
      %s20 = sphi 0, %s24
      %p21 = scmp.ge.s32.totalorder %s20, 4
      %s28 = sphi 0, %s28
      %s30 = sphi 0, %s28
      %s31 = sphi 0, %s30
      %s45 = sphi 0, %s31
      %s49 = sphi 0, %s49
      %s51 = sphi 0, %s49
      %s52 = sphi 0, %s51
      %s66 = sphi 0, %s52
      %s70 = sphi 0, %s70
      %s72 = sphi 0, %s70
      %s73 = sphi 0, %s72
      %s87 = sphi 0, %s73
      %s91 = sphi 0, %s91
      %s93 = sphi 0, %s91
      %s94 = sphi 0, %s93
      %s108 = sphi 0, %s94
      %s112 = sphi 0, %s112
      %s114 = sphi 0, %s112
      %s115 = sphi 0, %s114
      %s129 = sphi 0, %s115
      %s135 = sphi 0, %s137
      %s138 = sphi 0, %s135
      %s139 = sphi 0, %s138
      %s155 = sphi 0, %s139
      %s161 = sphi 0, %s163
      %s164 = sphi 0, %s161
      %s165 = sphi 0, %s164
      %s181 = sphi 0, %s165
      %s187 = sphi 0, %s189
      %s190 = sphi 0, %s187
      %s191 = sphi 0, %s190
      %s207 = sphi 0, %s191
      %s213 = sphi 0, %s215
      %s216 = sphi 0, %s213
      %s217 = sphi 0, %s216
      %s233 = sphi 0, %s217
      %s237 = sphi 0, %s237
      %s239 = sphi 0, %s237
      %s240 = sphi 0, %s239
      %s254 = sphi 0, %s240
      %s258 = sphi 0, %s258
      %s260 = sphi 0, %s258
      %s261 = sphi 0, %s260
      %s275 = sphi 0, %s261
      %s279 = sphi 0, %s279
      %s281 = sphi 0, %s279
      %s282 = sphi 0, %s281
      %s296 = sphi 0, %s282
      %s302 = sphi 0, %s304
      %s305 = sphi 0, %s302
      %s306 = sphi 0, %s305
      %s322 = sphi 0, %s306
    $region4: #{tpu_custom_call.1} parent=1 // loop_header_branch
      %23 = sbr.rel (%p21) target = $region8
    $region5: #{tpu_custom_call.1} parent=1 // loop_body
      %s25 = ssub.s32 %s20, 1
      %s26 = ssub.s32 %s20, 2
      %s27 = sadd.s32 %s20, 1
      %s29 = sadd.s32 %s28, 1
      %p32 = scmp.eq.s32.totalorder %s20, 1
      %p33 = scmp.ne.s32.totalorder %s28, %s30
      %p34 = scmp.eq.s32.totalorder %s20, 0
      %p35 = por %p33, %p34
      %p36 = scmp.ne.s32.totalorder %s28, %s30
      %p37 = scmp.eq.s32.totalorder %s25, 1
      %p38 = por %p36, %p37
      %p39 = scmp.ne.s32.totalorder %s30, %s31
      %p40 = scmp.eq.s32.totalorder %s25, 0
      %p41 = por %p39, %p40
      %p42 = scmp.ne.s32.totalorder %s30, %s31
      %p43 = scmp.eq.s32.totalorder %s26, 1
      %p44 = por %p42, %p43
      %p46 = scmp.ne.s32.totalorder %s31, %s45
      %p47 = scmp.eq.s32.totalorder %s26, 0
      %p48 = por %p46, %p47
      %s50 = sadd.s32 %s49, 1
      %p53 = scmp.eq.s32.totalorder %s20, 1
      %p54 = scmp.ne.s32.totalorder %s49, %s51
      %p55 = scmp.eq.s32.totalorder %s20, 0
      %p56 = por %p54, %p55
      %p57 = scmp.ne.s32.totalorder %s49, %s51
      %p58 = scmp.eq.s32.totalorder %s25, 1
      %p59 = por %p57, %p58
      %p60 = scmp.ne.s32.totalorder %s51, %s52
      %p61 = scmp.eq.s32.totalorder %s25, 0
      %p62 = por %p60, %p61
      %p63 = scmp.ne.s32.totalorder %s51, %s52
      %p64 = scmp.eq.s32.totalorder %s26, 1
      %p65 = por %p63, %p64
      %p67 = scmp.ne.s32.totalorder %s52, %s66
      %p68 = scmp.eq.s32.totalorder %s26, 0
      %p69 = por %p67, %p68
      %s71 = sadd.s32 %s70, 1
      %p74 = scmp.eq.s32.totalorder %s20, 1
      %p75 = scmp.ne.s32.totalorder %s70, %s72
      %p76 = scmp.eq.s32.totalorder %s20, 0
      %p77 = por %p75, %p76
      %p78 = scmp.ne.s32.totalorder %s70, %s72
      %p79 = scmp.eq.s32.totalorder %s25, 1
      %p80 = por %p78, %p79
      %p81 = scmp.ne.s32.totalorder %s72, %s73
      %p82 = scmp.eq.s32.totalorder %s25, 0
      %p83 = por %p81, %p82
      %p84 = scmp.ne.s32.totalorder %s72, %s73
      %p85 = scmp.eq.s32.totalorder %s26, 1
      %p86 = por %p84, %p85
      %p88 = scmp.ne.s32.totalorder %s73, %s87
      %p89 = scmp.eq.s32.totalorder %s26, 0
      %p90 = por %p88, %p89
      %s92 = sadd.s32 %s91, 1
      %p95 = scmp.eq.s32.totalorder %s20, 1
      %p96 = scmp.ne.s32.totalorder %s91, %s93
      %p97 = scmp.eq.s32.totalorder %s20, 0
      %p98 = por %p96, %p97
      %p99 = scmp.ne.s32.totalorder %s91, %s93
      %p100 = scmp.eq.s32.totalorder %s25, 1
      %p101 = por %p99, %p100
      %p102 = scmp.ne.s32.totalorder %s93, %s94
      %p103 = scmp.eq.s32.totalorder %s25, 0
      %p104 = por %p102, %p103
      %p105 = scmp.ne.s32.totalorder %s93, %s94
      %p106 = scmp.eq.s32.totalorder %s26, 1
      %p107 = por %p105, %p106
      %p109 = scmp.ne.s32.totalorder %s94, %s108
      %p110 = scmp.eq.s32.totalorder %s26, 0
      %p111 = por %p109, %p110
      %s113 = sadd.s32 %s112, 1
      %p116 = scmp.eq.s32.totalorder %s20, 1
      %p117 = scmp.ne.s32.totalorder %s112, %s114
      %p118 = scmp.eq.s32.totalorder %s20, 0
      %p119 = por %p117, %p118
      %p120 = scmp.ne.s32.totalorder %s112, %s114
      %p121 = scmp.eq.s32.totalorder %s25, 1
      %p122 = por %p120, %p121
      %p123 = scmp.ne.s32.totalorder %s114, %s115
      %p124 = scmp.eq.s32.totalorder %s25, 0
      %p125 = por %p123, %p124
      %p126 = scmp.ne.s32.totalorder %s114, %s115
      %p127 = scmp.eq.s32.totalorder %s26, 1
      %p128 = por %p126, %p127
      %p130 = scmp.ne.s32.totalorder %s115, %s129
      %p131 = scmp.eq.s32.totalorder %s26, 0
      %p132 = por %p130, %p131
      %s133 = ssub.s32 %s20, %s27
      %p134 = scmp.eq.s32.totalorder %s133, 0
      %s136 = sadd.s32 %s135, 1
      %s137 = scalar_select %p134, %s135, %s136
      %p140 = pneg %p134
      %p141 = scmp.eq.s32.totalorder %s20, 1
      %p142 = por %p140, %p141
      %p143 = scmp.ne.s32.totalorder %s135, %s138
      %p144 = scmp.eq.s32.totalorder %s20, 0
      %p145 = por %p143, %p144
      %p146 = scmp.ne.s32.totalorder %s135, %s138
      %p147 = scmp.eq.s32.totalorder %s25, 1
      %p148 = por %p146, %p147
      %p149 = scmp.ne.s32.totalorder %s138, %s139
      %p150 = scmp.eq.s32.totalorder %s25, 0
      %p151 = por %p149, %p150
      %p152 = scmp.ne.s32.totalorder %s138, %s139
      %p153 = scmp.eq.s32.totalorder %s26, 1
      %p154 = por %p152, %p153
      %p156 = scmp.ne.s32.totalorder %s139, %s155
      %p157 = scmp.eq.s32.totalorder %s26, 0
      %p158 = por %p156, %p157
      %s159 = ssub.s32 %s20, %s27
      %p160 = scmp.eq.s32.totalorder %s159, 0
      %s162 = sadd.s32 %s161, 1
      %s163 = scalar_select %p160, %s161, %s162
      %p166 = pneg %p160
      %p167 = scmp.eq.s32.totalorder %s20, 1
      %p168 = por %p166, %p167
      %p169 = scmp.ne.s32.totalorder %s161, %s164
      %p170 = scmp.eq.s32.totalorder %s20, 0
      %p171 = por %p169, %p170
      %p172 = scmp.ne.s32.totalorder %s161, %s164
      %p173 = scmp.eq.s32.totalorder %s25, 1
      %p174 = por %p172, %p173
      %p175 = scmp.ne.s32.totalorder %s164, %s165
      %p176 = scmp.eq.s32.totalorder %s25, 0
      %p177 = por %p175, %p176
      %p178 = scmp.ne.s32.totalorder %s164, %s165
      %p179 = scmp.eq.s32.totalorder %s26, 1
      %p180 = por %p178, %p179
      %p182 = scmp.ne.s32.totalorder %s165, %s181
      %p183 = scmp.eq.s32.totalorder %s26, 0
      %p184 = por %p182, %p183
      %s185 = ssub.s32 %s20, %s27
      %p186 = scmp.eq.s32.totalorder %s185, 0
      %s188 = sadd.s32 %s187, 1
      %s189 = scalar_select %p186, %s187, %s188
      %p192 = pneg %p186
      %p193 = scmp.eq.s32.totalorder %s20, 1
      %p194 = por %p192, %p193
      %p195 = scmp.ne.s32.totalorder %s187, %s190
      %p196 = scmp.eq.s32.totalorder %s20, 0
      %p197 = por %p195, %p196
      %p198 = scmp.ne.s32.totalorder %s187, %s190
      %p199 = scmp.eq.s32.totalorder %s25, 1
      %p200 = por %p198, %p199
      %p201 = scmp.ne.s32.totalorder %s190, %s191
      %p202 = scmp.eq.s32.totalorder %s25, 0
      %p203 = por %p201, %p202
      %p204 = scmp.ne.s32.totalorder %s190, %s191
      %p205 = scmp.eq.s32.totalorder %s26, 1
      %p206 = por %p204, %p205
      %p208 = scmp.ne.s32.totalorder %s191, %s207
      %p209 = scmp.eq.s32.totalorder %s26, 0
      %p210 = por %p208, %p209
      %s211 = ssub.s32 %s20, %s27
      %p212 = scmp.eq.s32.totalorder %s211, 0
      %s214 = sadd.s32 %s213, 1
      %s215 = scalar_select %p212, %s213, %s214
      %p218 = pneg %p212
      %p219 = scmp.eq.s32.totalorder %s20, 1
      %p220 = por %p218, %p219
      %p221 = scmp.ne.s32.totalorder %s213, %s216
      %p222 = scmp.eq.s32.totalorder %s20, 0
      %p223 = por %p221, %p222
      %p224 = scmp.ne.s32.totalorder %s213, %s216
      %p225 = scmp.eq.s32.totalorder %s25, 1
      %p226 = por %p224, %p225
      %p227 = scmp.ne.s32.totalorder %s216, %s217
      %p228 = scmp.eq.s32.totalorder %s25, 0
      %p229 = por %p227, %p228
      %p230 = scmp.ne.s32.totalorder %s216, %s217
      %p231 = scmp.eq.s32.totalorder %s26, 1
      %p232 = por %p230, %p231
      %p234 = scmp.ne.s32.totalorder %s217, %s233
      %p235 = scmp.eq.s32.totalorder %s26, 0
      %p236 = por %p234, %p235
      %s238 = sadd.s32 %s237, 1
      %p241 = scmp.eq.s32.totalorder %s20, 1
      %p242 = scmp.ne.s32.totalorder %s237, %s239
      %p243 = scmp.eq.s32.totalorder %s20, 0
      %p244 = por %p242, %p243
      %p245 = scmp.ne.s32.totalorder %s237, %s239
      %p246 = scmp.eq.s32.totalorder %s25, 1
      %p247 = por %p245, %p246
      %p248 = scmp.ne.s32.totalorder %s239, %s240
      %p249 = scmp.eq.s32.totalorder %s25, 0
      %p250 = por %p248, %p249
      %p251 = scmp.ne.s32.totalorder %s239, %s240
      %p252 = scmp.eq.s32.totalorder %s26, 1
      %p253 = por %p251, %p252
      %p255 = scmp.ne.s32.totalorder %s240, %s254
      %p256 = scmp.eq.s32.totalorder %s26, 0
      %p257 = por %p255, %p256
      %s259 = sadd.s32 %s258, 1
      %p262 = scmp.eq.s32.totalorder %s20, 1
      %p263 = scmp.ne.s32.totalorder %s258, %s260
      %p264 = scmp.eq.s32.totalorder %s20, 0
      %p265 = por %p263, %p264
      %p266 = scmp.ne.s32.totalorder %s258, %s260
      %p267 = scmp.eq.s32.totalorder %s25, 1
      %p268 = por %p266, %p267
      %p269 = scmp.ne.s32.totalorder %s260, %s261
      %p270 = scmp.eq.s32.totalorder %s25, 0
      %p271 = por %p269, %p270
      %p272 = scmp.ne.s32.totalorder %s260, %s261
      %p273 = scmp.eq.s32.totalorder %s26, 1
      %p274 = por %p272, %p273
      %p276 = scmp.ne.s32.totalorder %s261, %s275
      %p277 = scmp.eq.s32.totalorder %s26, 0
      %p278 = por %p276, %p277
      %s280 = sadd.s32 %s279, 1
      %p283 = scmp.eq.s32.totalorder %s20, 1
      %p284 = scmp.ne.s32.totalorder %s279, %s281
      %p285 = scmp.eq.s32.totalorder %s20, 0
      %p286 = por %p284, %p285
      %p287 = scmp.ne.s32.totalorder %s279, %s281
      %p288 = scmp.eq.s32.totalorder %s25, 1
      %p289 = por %p287, %p288
      %p290 = scmp.ne.s32.totalorder %s281, %s282
      %p291 = scmp.eq.s32.totalorder %s25, 0
      %p292 = por %p290, %p291
      %p293 = scmp.ne.s32.totalorder %s281, %s282
      %p294 = scmp.eq.s32.totalorder %s26, 1
      %p295 = por %p293, %p294
      %p297 = scmp.ne.s32.totalorder %s282, %s296
      %p298 = scmp.eq.s32.totalorder %s26, 0
      %p299 = por %p297, %p298
      %s300 = ssub.s32 %s20, %s27
      %p301 = scmp.eq.s32.totalorder %s300, 0
      %s303 = sadd.s32 %s302, 1
      %s304 = scalar_select %p301, %s302, %s303
      %p307 = pneg %p301
      %p308 = scmp.eq.s32.totalorder %s20, 1
      %p309 = por %p307, %p308
      %p310 = scmp.ne.s32.totalorder %s302, %s305
      %p311 = scmp.eq.s32.totalorder %s20, 0
      %p312 = por %p310, %p311
      %p313 = scmp.ne.s32.totalorder %s302, %s305
      %p314 = scmp.eq.s32.totalorder %s25, 1
      %p315 = por %p313, %p314
      %p316 = scmp.ne.s32.totalorder %s305, %s306
      %p317 = scmp.eq.s32.totalorder %s25, 0
      %p318 = por %p316, %p317
      %p319 = scmp.ne.s32.totalorder %s305, %s306
      %p320 = scmp.eq.s32.totalorder %s26, 1
      %p321 = por %p319, %p320
      %p323 = scmp.ne.s32.totalorder %s306, %s322
      %p324 = scmp.eq.s32.totalorder %s26, 0
      %p325 = por %p323, %p324
      %p326 = scmp.le.s32.totalorder 1, %s20
      %p327 = scmp.lt.s32.totalorder %s20, 3
      %p328 = pnand %p326, %p327
      %p329 = pneg %p328
      // Predicated region
      $region9: #{tpu_custom_call.1} parent=5 // pred_check
        _
      $region10: #{tpu_custom_call.1} parent=5 // pred_check_branch
        %331 = sbr.rel (%p328) target = $region12
      $region11: #{tpu_custom_call.1} parent=5 // pred_region
        %s332 = ssub.s32 %s20, 1
        // Predicated region
        $region13: #{tpu_custom_call.1} parent=11 // pred_check
          %p333 = pneg %p41
        $region14: #{tpu_custom_call.1} parent=11 // pred_check_branch
          %335 = sbr.rel (%p333) target = $region16
        $region15: #{tpu_custom_call.1} parent=11 // pred_region
          _
        $region16: #{tpu_custom_call.1} parent=11 // pred_fallthru
          _
        // Predicated region
        $region17: #{tpu_custom_call.1} parent=11 // pred_check
          %p336 = pneg %p62
        $region18: #{tpu_custom_call.1} parent=11 // pred_check_branch
          %338 = sbr.rel (%p336) target = $region20
        $region19: #{tpu_custom_call.1} parent=11 // pred_region
          _
        $region20: #{tpu_custom_call.1} parent=11 // pred_fallthru
          _
        // Predicated region
        $region21: #{tpu_custom_call.1} parent=11 // pred_check
          %p339 = pneg %p83
        $region22: #{tpu_custom_call.1} parent=11 // pred_check_branch
          %341 = sbr.rel (%p339) target = $region24
        $region23: #{tpu_custom_call.1} parent=11 // pred_region
          _
        $region24: #{tpu_custom_call.1} parent=11 // pred_fallthru
          _
        // Predicated region
        $region25: #{tpu_custom_call.1} parent=11 // pred_check
          %p342 = pneg %p104
        $region26: #{tpu_custom_call.1} parent=11 // pred_check_branch
          %344 = sbr.rel (%p342) target = $region28
        $region27: #{tpu_custom_call.1} parent=11 // pred_region
          _
        $region28: #{tpu_custom_call.1} parent=11 // pred_fallthru
          _
        // Predicated region
        $region29: #{tpu_custom_call.1} parent=11 // pred_check
          %p345 = pneg %p125
        $region30: #{tpu_custom_call.1} parent=11 // pred_check_branch
          %347 = sbr.rel (%p345) target = $region32
        $region31: #{tpu_custom_call.1} parent=11 // pred_region
          _
        $region32: #{tpu_custom_call.1} parent=11 // pred_fallthru
          _
        // Predicated region
        $region33: #{tpu_custom_call.1} parent=11 // pred_check
          %p348 = pneg %p250
        $region34: #{tpu_custom_call.1} parent=11 // pred_check_branch
          %350 = sbr.rel (%p348) target = $region36
        $region35: #{tpu_custom_call.1} parent=11 // pred_region
          _
        $region36: #{tpu_custom_call.1} parent=11 // pred_fallthru
          _
        // Predicated region
        $region37: #{tpu_custom_call.1} parent=11 // pred_check
          %p351 = pneg %p271
        $region38: #{tpu_custom_call.1} parent=11 // pred_check_branch
          %353 = sbr.rel (%p351) target = $region40
        $region39: #{tpu_custom_call.1} parent=11 // pred_region
          _
        $region40: #{tpu_custom_call.1} parent=11 // pred_fallthru
          _
      $region12: #{tpu_custom_call.1} parent=5 // pred_fallthru
        _
      %p354 = scmp.lt.s32.totalorder %s20, 2
      // Predicated region
      $region41: #{tpu_custom_call.1} parent=5 // pred_check
        %p355 = pneg %p354
      $region42: #{tpu_custom_call.1} parent=5 // pred_check_branch
        %357 = sbr.rel (%p355) target = $region44
      $region43: #{tpu_custom_call.1} parent=5 // pred_region
        // Predicated region
        $region45: #{tpu_custom_call.1} parent=43 // pred_check
          %p358 = pneg %p145
        $region46: #{tpu_custom_call.1} parent=43 // pred_check_branch
          %360 = sbr.rel (%p358) target = $region48
        $region47: #{tpu_custom_call.1} parent=43 // pred_region
          %s361 = smul.u32 16, %s20
          %p362 = scmp.lt.s32.totalorder %s361, 31
          %s363 = scalar_select %p362, %s361, 31
          %s364 = smul.addr %s363, 8
          %s365 = scalar_lea.vmem %s5, %s364
          %s366 = smul.u32 16, %s20
        $region48: #{tpu_custom_call.1} parent=43 // pred_fallthru
          _
        // Predicated region
        $region49: #{tpu_custom_call.1} parent=43 // pred_check
          %p367 = pneg %p171
        $region50: #{tpu_custom_call.1} parent=43 // pred_check_branch
          %369 = sbr.rel (%p367) target = $region52
        $region51: #{tpu_custom_call.1} parent=43 // pred_region
          %s370 = smul.u32 16, %s20
          %p371 = scmp.lt.s32.totalorder %s370, 31
          %s372 = scalar_select %p371, %s370, 31
          %s373 = smul.addr %s372, 8
          %s374 = scalar_lea.vmem %s6, %s373
          %s375 = smul.u32 16, %s20
        $region52: #{tpu_custom_call.1} parent=43 // pred_fallthru
          _
        // Predicated region
        $region53: #{tpu_custom_call.1} parent=43 // pred_check
          %p376 = pneg %p197
        $region54: #{tpu_custom_call.1} parent=43 // pred_check_branch
          %378 = sbr.rel (%p376) target = $region56
        $region55: #{tpu_custom_call.1} parent=43 // pred_region
          %s379 = smul.u32 16, %s20
          %p380 = scmp.lt.s32.totalorder %s379, 31
          %s381 = scalar_select %p380, %s379, 31
          %s382 = smul.addr %s381, 8
          %s383 = scalar_lea.vmem %s7, %s382
          %s384 = smul.u32 16, %s20
        $region56: #{tpu_custom_call.1} parent=43 // pred_fallthru
          _
        // Predicated region
        $region57: #{tpu_custom_call.1} parent=43 // pred_check
          %p385 = pneg %p223
        $region58: #{tpu_custom_call.1} parent=43 // pred_check_branch
          %387 = sbr.rel (%p385) target = $region60
        $region59: #{tpu_custom_call.1} parent=43 // pred_region
          %p388 = scmp.lt.s32.totalorder %s20, 1
          %s389 = scalar_select %p388, %s20, 1
          %s390 = scalar_lea.vmem %s8, %s389
        $region60: #{tpu_custom_call.1} parent=43 // pred_fallthru
          _
      $region44: #{tpu_custom_call.1} parent=5 // pred_fallthru
        _
      %p391 = scmp.le.s32.totalorder 1, %s20
      %p392 = scmp.lt.s32.totalorder %s20, 3
      %p393 = pnand %p391, %p392
      %p394 = pneg %p393
      // Predicated region
      $region61: #{tpu_custom_call.1} parent=5 // pred_check
        _
      $region62: #{tpu_custom_call.1} parent=5 // pred_check_branch
        %396 = sbr.rel (%p393) target = $region64
      $region63: #{tpu_custom_call.1} parent=5 // pred_region
        %s397 = ssub.s32 %s20, 1
        %p398 = pneg %p41
        %p399 = pneg %p38
        %p400 = pneg %p62
        %p401 = pneg %p59
        %p402 = pneg %p83
        %p403 = pneg %p80
        %p404 = pneg %p104
        %p405 = pneg %p101
        %p406 = pneg %p125
        %p407 = pneg %p122
        %s408 = smul.u32 16, %s25
        %p409 = scmp.lt.s32.totalorder %s408, 31
        %s410 = scalar_select %p409, %s408, 31
        %s411 = smul.addr %s410, 8
        %s412 = scalar_lea.vmem %s5, %s411
        %p413 = pneg %p151
        %p414 = pneg %p148
        %s415 = smul.u32 16, %s25
        %p416 = scmp.lt.s32.totalorder %s415, 31
        %s417 = scalar_select %p416, %s415, 31
        %s418 = smul.addr %s417, 8
        %s419 = scalar_lea.vmem %s6, %s418
        %p420 = pneg %p177
        %p421 = pneg %p174
        %s422 = smul.u32 16, %s25
        %p423 = scmp.lt.s32.totalorder %s422, 31
        %s424 = scalar_select %p423, %s422, 31
        %s425 = smul.addr %s424, 8
        %s426 = scalar_lea.vmem %s7, %s425
        %p427 = pneg %p203
        %p428 = pneg %p200
        %p429 = scmp.lt.s32.totalorder %s25, 1
        %s430 = scalar_select %p429, %s25, 1
        %s431 = scalar_lea.vmem %s8, %s430
        %p432 = pneg %p229
        %p433 = pneg %p226
        %p434 = pneg %p250
        %p435 = pneg %p247
        %p436 = pneg %p271
        %p437 = pneg %p268
        %p438 = pneg %p292
        %p439 = pneg %p289
        %p440 = pneg %p318
        %p441 = pneg %p315
        %s442 = smul.u32 16, %s25
        %p443 = scmp.lt.s32.totalorder %s442, 31
        %s444 = scalar_select %p443, %s442, 31
        %s445 = smul.addr %s444, 8
        %s446 = scalar_lea.vmem %s12, %s445
        %s447 = smul.u32 16, %s25
        %p448 = scmp.lt.s32.totalorder %s447, 31
        %s449 = scalar_select %p448, %s447, 31
        %s450 = smul.addr %s449, 8
        %s451 = scalar_lea.vmem %s5, %s450
        %s452 = smul.u32 16, %s25
        %s453 = smul.u32 16, %s25
        %p454 = scmp.lt.s32.totalorder %s453, 31
        %s455 = scalar_select %p454, %s453, 31
        %s456 = smul.addr %s455, 8
        %s457 = scalar_lea.vmem %s6, %s456
        %s458 = smul.u32 16, %s25
        %s459 = smul.u32 16, %s25
        %p460 = scmp.lt.s32.totalorder %s459, 31
        %s461 = scalar_select %p460, %s459, 31
        %s462 = smul.addr %s461, 8
        %s463 = scalar_lea.vmem %s7, %s462
        %s464 = smul.u32 16, %s25
        %p465 = scmp.lt.s32.totalorder %s25, 1
        %s466 = scalar_select %p465, %s25, 1
        %s467 = scalar_lea.vmem %s8, %s466
        %s468 = smul.u32 16, %s25
        %p469 = scmp.lt.s32.totalorder %s468, 31
        %s470 = scalar_select %p469, %s468, 31
        %s471 = smul.addr %s470, 8
        %s472 = scalar_lea.vmem %s12, %s471
        %s473 = smul.u32 16, %s25
        %p474 = scmp.eq.s32.totalorder %s25, 0
        // Predicated region
        $region65: #{tpu_custom_call.1} parent=63 // pred_check
          %p475 = pneg %p474
        $region66: #{tpu_custom_call.1} parent=63 // pred_check_branch
          %477 = sbr.rel (%p475) target = $region68
        $region67: #{tpu_custom_call.1} parent=63 // pred_region
          %v478 = vld [vmem:[%s0] sm:$0xff]
          %v479 = vld [vmem:[%s0 + $0x8] sm:$0xff]
          %v480 = vld [vmem:[%s0 + $0x10] sm:$0xff]
          %v481 = vld [vmem:[%s1] sm:$0xff]
          %v482 = vld [vmem:[%s1 + $0x8] sm:$0xff]
          %v483 = vld [vmem:[%s2] sm:$0x1]
          %v485 = vlaneseq
          %v486 = vshrl.u32 %v485, 7
          %v487 = vsub.s32 0, %v486
          %v488 = vrot.slane %v483, %v487
          %vm490 = vcmask 130048
          %v492 = vsel %vm490, %v478, 0
          %v495 = vsel %vm490, %v479, 0
          %v498 = vsel %vm490, %v480, 0
          %500 = vmatprep.subr.mxu0 0.0
          %501 = vmatpush1.msra.mxu0 %v481
          %502 = vmatprep.subr.mxu0 0.0
          %503 = vmatpush1.msra.mxu0 %v482
          %504 = vmatprep.subr.mxu0 0.0
          %505 = vmatpush1.msra.mxu0 0.0
          %506 = vmatprep.subr.mxu0 0.0
          %507 = vmatpush1.msra.mxu0 0.0
          %508 = vmatprep.subr.mxu0 0.0
          %509 = vmatpush1.msra.mxu0 0.0
          %510 = vmatprep.subr.mxu0 0.0
          %511 = vmatpush1.msra.mxu0 0.0
          %512 = vmatprep.subr.mxu0 0.0
          %513 = vmatpush1.msra.mxu0 0.0
          %514 = vmatprep.subr.mxu0 0.0
          %515 = vmatpush1.msra.mxu0 0.0
          %516 = vmatprep.subr.mxu0 0.0
          %517 = vmatpush1.msra.mxu0 0.0
          %518 = vmatprep.subr.mxu0 0.0
          %519 = vmatpush1.msra.mxu0 0.0
          %520 = vmatprep.subr.mxu0 0.0
          %521 = vmatpush1.msra.mxu0 0.0
          %522 = vmatprep.subr.mxu0 0.0
          %523 = vmatpush1.msra.mxu0 0.0
          %524 = vmatprep.subr.mxu0 0.0
          %525 = vmatpush1.msra.mxu0 0.0
          %526 = vmatprep.subr.mxu0 0.0
          %527 = vmatpush1.msra.mxu0 0.0
          %528 = vmatprep.subr.mxu0 0.0
          %529 = vmatpush1.msra.mxu0 0.0
          %530 = vmatprep.subr.mxu0 0.0
          %531 = vmatpush1.msra.mxu0 0.0
          %532 = vmatprep.subr.mxu0 0.0
          %533 = vmatpush1.msra.mxu0 0.0
          %534 = vmatprep.subr.mxu0 0.0
          %535 = vmatpush1.msra.mxu0 0.0
          %536 = vmatprep.subr.mxu0 0.0
          %537 = vmatpush1.msra.mxu0 0.0
          %538 = vmatprep.subr.mxu0 0.0
          %539 = vmatpush1.msra.mxu0 0.0
          %540 = vmatprep.subr.mxu0 0.0
          %541 = vmatpush1.msra.mxu0 0.0
          %542 = vmatprep.subr.mxu0 0.0
          %543 = vmatpush1.msra.mxu0 0.0
          %544 = vmatprep.subr.mxu0 0.0
          %545 = vmatpush1.msra.mxu0 0.0
          %546 = vmatprep.subr.mxu0 0.0
          %547 = vmatpush1.msra.mxu0 0.0
          %548 = vmatprep.subr.mxu0 0.0
          %549 = vmatpush1.msra.mxu0 0.0
          %550 = vmatprep.subr.mxu0 0.0
          %551 = vmatpush1.msra.mxu0 0.0
          %552 = vmatprep.subr.mxu0 0.0
          %553 = vmatpush1.msra.mxu0 0.0
          %554 = vmatprep.subr.mxu0 0.0
          %555 = vmatpush1.msra.mxu0 0.0
          %556 = vmatprep.subr.mxu0 0.0
          %557 = vmatpush1.msra.mxu0 0.0
          %558 = vmatprep.subr.mxu0 0.0
          %559 = vmatpush1.msra.mxu0 0.0
          %560 = vmatprep.subr.mxu0 0.0
          %561 = vmatpush1.msra.mxu0 0.0
          %562 = vmatprep.subr.mxu0 0.0
          %563 = vmatpush1.msra.mxu0 0.0
          %564 = vmatprep.mubr.f32.mxu0 0.0
          %565 = vmatmul.mubr.f32.gmra.mrb[0].mxu0 %v492
          %v566 = vpop.f32.mrb[0].mxu0
          %v567 = vadd.f32 %v488, %v566
          %v568 = vpop.f32.mrb[0].mxu0
          %569 = vmatprep.mubr.f32.mxu0 0.0
          %570 = vmatmul.mubr.f32.gmra.mrb[0].mxu0 %v495
          %v571 = vpop.f32.mrb[0].mxu0
          %v572 = vadd.f32 %v488, %v571
          %v573 = vpop.f32.mrb[0].mxu0
          %574 = vmatprep.mubr.f32.mxu0 0.0
          %575 = vmatmul.mubr.f32.gmra.mrb[0].mxu0 %v498
          %v576 = vpop.f32.mrb[0].mxu0
          %v577 = vadd.f32 %v488, %v576
          %v578 = vpop.f32.mrb[0].mxu0
          %579 = vdwg.mxu0
          %vm580 = vcmask 261120
          %581 = vst.msk [vmem:[#allocation2] sm:$0xff] %vm580, %v567
          %582 = vst.msk [vmem:[#allocation2 + $0x8] sm:$0xff] %vm580, %v572
          %583 = vst.msk [vmem:[#allocation2 + $0x10] sm:$0xff] %vm580, %v577
          %587 = vrot.lane.b32.xlu0 %v567, 96
          %v588 = vpop.permute.xlu0 %587
          %589 = vrot.lane.b32.xlu0 %v572, 96
          %v590 = vpop.permute.xlu0 %589
          %591 = vrot.lane.b32.xlu0 %v577, 96
          %v592 = vpop.permute.xlu0 %591
          %vm596 = vcmask 523264
          %597 = vst.msk [vmem:[#allocation3] sm:$0xff] %vm596, %v588
          %598 = vst.msk [vmem:[#allocation3 + $0x8] sm:$0xff] %vm596, %v590
          %599 = vst.msk [vmem:[#allocation3 + $0x10] sm:$0xff] %vm596, %v592
          %vm600 = vcmask 293888
          %601 = vst.msk [vmem:[#allocation4] sm:$0xff] %vm600, 0.0
          %602 = vst.msk [vmem:[#allocation4 + $0x8] sm:$0xff] %vm600, 0.0
          %603 = vst.msk [vmem:[#allocation4 + $0x10] sm:$0xff] %vm600, 0.0
        $region68: #{tpu_custom_call.1} parent=63 // pred_fallthru
          _
        %v604 = vld [vmem:[%s457] sm:$0xff]
        %v605 = vld [vmem:[%s457 + $0x8] sm:$0xff]
        %v606 = vld [vmem:[%s457 + $0x10] sm:$0xff]
        %v607 = vld [vmem:[%s457 + $0x18] sm:$0xff]
        %v608 = vld [vmem:[%s457 + $0x20] sm:$0xff]
        %v609 = vld [vmem:[%s457 + $0x28] sm:$0xff]
        %v610 = vld [vmem:[%s457 + $0x30] sm:$0xff]
        %v611 = vld [vmem:[%s457 + $0x38] sm:$0xff]
        %v612 = vld [vmem:[%s457 + $0x40] sm:$0xff]
        %v613 = vld [vmem:[%s457 + $0x48] sm:$0xff]
        %v614 = vld [vmem:[%s457 + $0x50] sm:$0xff]
        %v615 = vld [vmem:[%s457 + $0x58] sm:$0xff]
        %v616 = vld [vmem:[%s457 + $0x60] sm:$0xff]
        %v617 = vld [vmem:[%s457 + $0x68] sm:$0xff]
        %v618 = vld [vmem:[%s457 + $0x70] sm:$0xff]
        %v619 = vld [vmem:[%s457 + $0x78] sm:$0xff]
        %v620 = vld [vmem:[%s463] sm:$0xff]
        %v621 = vld [vmem:[%s463 + $0x8] sm:$0xff]
        %v622 = vld [vmem:[%s463 + $0x10] sm:$0xff]
        %v623 = vld [vmem:[%s463 + $0x18] sm:$0xff]
        %v624 = vld [vmem:[%s463 + $0x20] sm:$0xff]
        %v625 = vld [vmem:[%s463 + $0x28] sm:$0xff]
        %v626 = vld [vmem:[%s463 + $0x30] sm:$0xff]
        %v627 = vld [vmem:[%s463 + $0x38] sm:$0xff]
        %v628 = vld [vmem:[%s463 + $0x40] sm:$0xff]
        %v629 = vld [vmem:[%s463 + $0x48] sm:$0xff]
        %v630 = vld [vmem:[%s463 + $0x50] sm:$0xff]
        %v631 = vld [vmem:[%s463 + $0x58] sm:$0xff]
        %v632 = vld [vmem:[%s463 + $0x60] sm:$0xff]
        %v633 = vld [vmem:[%s463 + $0x68] sm:$0xff]
        %v634 = vld [vmem:[%s463 + $0x70] sm:$0xff]
        %v635 = vld [vmem:[%s463 + $0x78] sm:$0xff]
        %v636 = vld [vmem:[%s467] sm:$0x1]
        %v637 = vlaneseq
        %v638 = vand.u32 %v637, 127
        %639 = vset.pattern.permute.xlu0 0
        %640 = vperm.xlu0 %639, %v604
        %v641 = vpop.permute.xlu0 %640
        %642 = vset.pattern.permute.xlu0 0
        %643 = vperm.xlu0 %642, %v605
        %v644 = vpop.permute.xlu0 %643
        %645 = vset.pattern.permute.xlu0 0
        %646 = vperm.xlu0 %645, %v606
        %v647 = vpop.permute.xlu0 %646
        %648 = vset.pattern.permute.xlu0 0
        %649 = vperm.xlu0 %648, %v607
        %v650 = vpop.permute.xlu0 %649
        %651 = vset.pattern.permute.xlu0 0
        %652 = vperm.xlu0 %651, %v608
        %v653 = vpop.permute.xlu0 %652
        %654 = vset.pattern.permute.xlu0 0
        %655 = vperm.xlu0 %654, %v609
        %v656 = vpop.permute.xlu0 %655
        %657 = vset.pattern.permute.xlu0 0
        %658 = vperm.xlu0 %657, %v610
        %v659 = vpop.permute.xlu0 %658
        %660 = vset.pattern.permute.xlu0 0
        %661 = vperm.xlu0 %660, %v611
        %v662 = vpop.permute.xlu0 %661
        %663 = vset.pattern.permute.xlu0 0
        %664 = vperm.xlu0 %663, %v612
        %v665 = vpop.permute.xlu0 %664
        %666 = vset.pattern.permute.xlu0 0
        %667 = vperm.xlu0 %666, %v613
        %v668 = vpop.permute.xlu0 %667
        %669 = vset.pattern.permute.xlu0 0
        %670 = vperm.xlu0 %669, %v614
        %v671 = vpop.permute.xlu0 %670
        %672 = vset.pattern.permute.xlu0 0
        %673 = vperm.xlu0 %672, %v615
        %v674 = vpop.permute.xlu0 %673
        %675 = vset.pattern.permute.xlu0 0
        %676 = vperm.xlu0 %675, %v616
        %v677 = vpop.permute.xlu0 %676
        %678 = vset.pattern.permute.xlu0 0
        %679 = vperm.xlu0 %678, %v617
        %v680 = vpop.permute.xlu0 %679
        %681 = vset.pattern.permute.xlu0 0
        %682 = vperm.xlu0 %681, %v618
        %v683 = vpop.permute.xlu0 %682
        %684 = vset.pattern.permute.xlu0 0
        %685 = vperm.xlu0 %684, %v619
        %v686 = vpop.permute.xlu0 %685
        %vm687 = vcmp.eq.s32.totalorder %v638, %v641
        %vm688 = vcmp.eq.s32.totalorder %v638, %v644
        %vm689 = vcmp.eq.s32.totalorder %v638, %v647
        %vm690 = vcmp.eq.s32.totalorder %v638, %v650
        %vm691 = vcmp.eq.s32.totalorder %v638, %v653
        %vm692 = vcmp.eq.s32.totalorder %v638, %v656
        %vm693 = vcmp.eq.s32.totalorder %v638, %v659
        %vm694 = vcmp.eq.s32.totalorder %v638, %v662
        %vm695 = vcmp.eq.s32.totalorder %v638, %v665
        %vm696 = vcmp.eq.s32.totalorder %v638, %v668
        %vm697 = vcmp.eq.s32.totalorder %v638, %v671
        %vm698 = vcmp.eq.s32.totalorder %v638, %v674
        %vm699 = vcmp.eq.s32.totalorder %v638, %v677
        %vm700 = vcmp.eq.s32.totalorder %v638, %v680
        %vm701 = vcmp.eq.s32.totalorder %v638, %v683
        %vm702 = vcmp.eq.s32.totalorder %v638, %v686
        %v703 = vsel %vm687, 1.0, 0.0
        %v704 = vsel %vm688, 1.0, 0.0
        %v705 = vsel %vm689, 1.0, 0.0
        %v706 = vsel %vm690, 1.0, 0.0
        %v707 = vsel %vm691, 1.0, 0.0
        %v708 = vsel %vm692, 1.0, 0.0
        %v709 = vsel %vm693, 1.0, 0.0
        %v710 = vsel %vm694, 1.0, 0.0
        %v711 = vsel %vm695, 1.0, 0.0
        %v712 = vsel %vm696, 1.0, 0.0
        %v713 = vsel %vm697, 1.0, 0.0
        %v714 = vsel %vm698, 1.0, 0.0
        %v715 = vsel %vm699, 1.0, 0.0
        %v716 = vsel %vm700, 1.0, 0.0
        %v717 = vsel %vm701, 1.0, 0.0
        %v718 = vsel %vm702, 1.0, 0.0
        %719 = vset.pattern.permute.xlu0 0
        %720 = vperm.xlu0 %719, %v620
        %v721 = vpop.permute.xlu0 %720
        %722 = vset.pattern.permute.xlu0 0
        %723 = vperm.xlu0 %722, %v621
        %v724 = vpop.permute.xlu0 %723
        %725 = vset.pattern.permute.xlu0 0
        %726 = vperm.xlu0 %725, %v622
        %v727 = vpop.permute.xlu0 %726
        %728 = vset.pattern.permute.xlu0 0
        %729 = vperm.xlu0 %728, %v623
        %v730 = vpop.permute.xlu0 %729
        %731 = vset.pattern.permute.xlu0 0
        %732 = vperm.xlu0 %731, %v624
        %v733 = vpop.permute.xlu0 %732
        %734 = vset.pattern.permute.xlu0 0
        %735 = vperm.xlu0 %734, %v625
        %v736 = vpop.permute.xlu0 %735
        %737 = vset.pattern.permute.xlu0 0
        %738 = vperm.xlu0 %737, %v626
        %v739 = vpop.permute.xlu0 %738
        %740 = vset.pattern.permute.xlu0 0
        %741 = vperm.xlu0 %740, %v627
        %v742 = vpop.permute.xlu0 %741
        %743 = vset.pattern.permute.xlu0 0
        %744 = vperm.xlu0 %743, %v628
        %v745 = vpop.permute.xlu0 %744
        %746 = vset.pattern.permute.xlu0 0
        %747 = vperm.xlu0 %746, %v629
        %v748 = vpop.permute.xlu0 %747
        %749 = vset.pattern.permute.xlu0 0
        %750 = vperm.xlu0 %749, %v630
        %v751 = vpop.permute.xlu0 %750
        %752 = vset.pattern.permute.xlu0 0
        %753 = vperm.xlu0 %752, %v631
        %v754 = vpop.permute.xlu0 %753
        %755 = vset.pattern.permute.xlu0 0
        %756 = vperm.xlu0 %755, %v632
        %v757 = vpop.permute.xlu0 %756
        %758 = vset.pattern.permute.xlu0 0
        %759 = vperm.xlu0 %758, %v633
        %v760 = vpop.permute.xlu0 %759
        %761 = vset.pattern.permute.xlu0 0
        %762 = vperm.xlu0 %761, %v634
        %v763 = vpop.permute.xlu0 %762
        %764 = vset.pattern.permute.xlu0 0
        %765 = vperm.xlu0 %764, %v635
        %v766 = vpop.permute.xlu0 %765
        %vm767 = vcmp.eq.s32.totalorder %v638, %v721
        %vm768 = vcmp.eq.s32.totalorder %v638, %v724
        %vm769 = vcmp.eq.s32.totalorder %v638, %v727
        %vm770 = vcmp.eq.s32.totalorder %v638, %v730
        %vm771 = vcmp.eq.s32.totalorder %v638, %v733
        %vm772 = vcmp.eq.s32.totalorder %v638, %v736
        %vm773 = vcmp.eq.s32.totalorder %v638, %v739
        %vm774 = vcmp.eq.s32.totalorder %v638, %v742
        %vm775 = vcmp.eq.s32.totalorder %v638, %v745
        %vm776 = vcmp.eq.s32.totalorder %v638, %v748
        %vm777 = vcmp.eq.s32.totalorder %v638, %v751
        %vm778 = vcmp.eq.s32.totalorder %v638, %v754
        %vm779 = vcmp.eq.s32.totalorder %v638, %v757
        %vm780 = vcmp.eq.s32.totalorder %v638, %v760
        %vm781 = vcmp.eq.s32.totalorder %v638, %v763
        %vm782 = vcmp.eq.s32.totalorder %v638, %v766
        %v783 = vsel %vm767, 1.0, 0.0
        %v784 = vsel %vm768, 1.0, 0.0
        %v785 = vsel %vm769, 1.0, 0.0
        %v786 = vsel %vm770, 1.0, 0.0
        %v787 = vsel %vm771, 1.0, 0.0
        %v788 = vsel %vm772, 1.0, 0.0
        %v789 = vsel %vm773, 1.0, 0.0
        %v790 = vsel %vm774, 1.0, 0.0
        %v791 = vsel %vm775, 1.0, 0.0
        %v792 = vsel %vm776, 1.0, 0.0
        %v793 = vsel %vm777, 1.0, 0.0
        %v794 = vsel %vm778, 1.0, 0.0
        %v795 = vsel %vm779, 1.0, 0.0
        %v796 = vsel %vm780, 1.0, 0.0
        %v797 = vsel %vm781, 1.0, 0.0
        %v798 = vsel %vm782, 1.0, 0.0
        %v799 = vlaneseq
        %v800 = vshrl.u32 %v799, 7
        %v801 = vadd.s32 %v800, 8
        %v802 = vadd.s32 %v800, 16
        %v803 = vlaneseq
        %v804 = vshrl.u32 %v803, 7
        %v805 = vsub.s32 0, %v804
        %v806 = vrot.slane %v636, %v805
        %vm807 = vcmp.eq.s32.totalorder %v800, %v806
        %vm808 = vcmp.eq.s32.totalorder %v801, %v806
        %vm809 = vcmp.eq.s32.totalorder %v802, %v806
        %v810 = vsel %vm807, 1.0, 0.0
        %v811 = vsel %vm808, 1.0, 0.0
        %v812 = vsel %vm809, 1.0, 0.0
        %v813 = vld [vmem:[#allocation3] sm:$0xff]
        %v814 = vld [vmem:[#allocation3 + $0x8] sm:$0xff]
        %v815 = vld [vmem:[#allocation3 + $0x10] sm:$0xff]
        %vm816 = vcmask 195584
        %v818 = vsel %vm816, %v703, 0
        %v821 = vsel %vm816, %v704, 0
        %v824 = vsel %vm816, %v705, 0
        %v827 = vsel %vm816, %v706, 0
        %v830 = vsel %vm816, %v707, 0
        %v833 = vsel %vm816, %v708, 0
        %v836 = vsel %vm816, %v709, 0
        %v839 = vsel %vm816, %v710, 0
        %v842 = vsel %vm816, %v711, 0
        %v845 = vsel %vm816, %v712, 0
        %v848 = vsel %vm816, %v713, 0
        %v851 = vsel %vm816, %v714, 0
        %v854 = vsel %vm816, %v715, 0
        %v857 = vsel %vm816, %v716, 0
        %v860 = vsel %vm816, %v717, 0
        %v863 = vsel %vm816, %v718, 0
        %865 = vmatprep.subr.mxu0 0.0
        %866 = vmatpush1.msra.mxu0 %v813
        %867 = vmatprep.subr.mxu0 0.0
        %868 = vmatpush1.msra.mxu0 %v814
        %869 = vmatprep.subr.mxu0 0.0
        %870 = vmatpush1.msra.mxu0 %v815
        %871 = vmatprep.subr.mxu0 0.0
        %872 = vmatpush1.msra.mxu0 0.0
        %873 = vmatprep.subr.mxu0 0.0
        %874 = vmatpush1.msra.mxu0 0.0
        %875 = vmatprep.subr.mxu0 0.0
        %876 = vmatpush1.msra.mxu0 0.0
        %877 = vmatprep.subr.mxu0 0.0
        %878 = vmatpush1.msra.mxu0 0.0
        %879 = vmatprep.subr.mxu0 0.0
        %880 = vmatpush1.msra.mxu0 0.0
        %881 = vmatprep.subr.mxu0 0.0
        %882 = vmatpush1.msra.mxu0 0.0
        %883 = vmatprep.subr.mxu0 0.0
        %884 = vmatpush1.msra.mxu0 0.0
        %885 = vmatprep.subr.mxu0 0.0
        %886 = vmatpush1.msra.mxu0 0.0
        %887 = vmatprep.subr.mxu0 0.0
        %888 = vmatpush1.msra.mxu0 0.0
        %889 = vmatprep.subr.mxu0 0.0
        %890 = vmatpush1.msra.mxu0 0.0
        %891 = vmatprep.subr.mxu0 0.0
        %892 = vmatpush1.msra.mxu0 0.0
        %893 = vmatprep.subr.mxu0 0.0
        %894 = vmatpush1.msra.mxu0 0.0
        %895 = vmatprep.subr.mxu0 0.0
        %896 = vmatpush1.msra.mxu0 0.0
        %897 = vmatprep.subr.mxu0 0.0
        %898 = vmatpush1.msra.mxu0 0.0
        %899 = vmatprep.subr.mxu0 0.0
        %900 = vmatpush1.msra.mxu0 0.0
        %901 = vmatprep.subr.mxu0 0.0
        %902 = vmatpush1.msra.mxu0 0.0
        %903 = vmatprep.subr.mxu0 0.0
        %904 = vmatpush1.msra.mxu0 0.0
        %905 = vmatprep.subr.mxu0 0.0
        %906 = vmatpush1.msra.mxu0 0.0
        %907 = vmatprep.subr.mxu0 0.0
        %908 = vmatpush1.msra.mxu0 0.0
        %909 = vmatprep.subr.mxu0 0.0
        %910 = vmatpush1.msra.mxu0 0.0
        %911 = vmatprep.subr.mxu0 0.0
        %912 = vmatpush1.msra.mxu0 0.0
        %913 = vmatprep.subr.mxu0 0.0
        %914 = vmatpush1.msra.mxu0 0.0
        %915 = vmatprep.subr.mxu0 0.0
        %916 = vmatpush1.msra.mxu0 0.0
        %917 = vmatprep.subr.mxu0 0.0
        %918 = vmatpush1.msra.mxu0 0.0
        %919 = vmatprep.subr.mxu0 0.0
        %920 = vmatpush1.msra.mxu0 0.0
        %921 = vmatprep.subr.mxu0 0.0
        %922 = vmatpush1.msra.mxu0 0.0
        %923 = vmatprep.subr.mxu0 0.0
        %924 = vmatpush1.msra.mxu0 0.0
        %925 = vmatprep.subr.mxu0 0.0
        %926 = vmatpush1.msra.mxu0 0.0
        %927 = vmatprep.subr.mxu0 0.0
        %928 = vmatpush1.msra.mxu0 0.0
        %929 = vmatprep.mubr.f32.mxu0 0.0
        %930 = vmatmul.mubr.f32.gmra.mrb[0].mxu0 %v818
        %v931 = vpop.f32.mrb[0].mxu0
        %v932 = vadd.f32 0.0, %v931
        %v933 = vpop.f32.mrb[0].mxu0
        %934 = vmatprep.mubr.f32.mxu0 0.0
        %935 = vmatmul.mubr.f32.gmra.mrb[0].mxu0 %v821
        %v936 = vpop.f32.mrb[0].mxu0
        %v937 = vadd.f32 0.0, %v936
        %v938 = vpop.f32.mrb[0].mxu0
        %939 = vmatprep.mubr.f32.mxu0 0.0
        %940 = vmatmul.mubr.f32.gmra.mrb[0].mxu0 %v824
        %v941 = vpop.f32.mrb[0].mxu0
        %v942 = vadd.f32 0.0, %v941
        %v943 = vpop.f32.mrb[0].mxu0
        %944 = vmatprep.mubr.f32.mxu0 0.0
        %945 = vmatmul.mubr.f32.gmra.mrb[0].mxu0 %v827
        %v946 = vpop.f32.mrb[0].mxu0
        %v947 = vadd.f32 0.0, %v946
        %v948 = vpop.f32.mrb[0].mxu0
        %949 = vmatprep.mubr.f32.mxu0 0.0
        %950 = vmatmul.mubr.f32.gmra.mrb[0].mxu0 %v830
        %v951 = vpop.f32.mrb[0].mxu0
        %v952 = vadd.f32 0.0, %v951
        %v953 = vpop.f32.mrb[0].mxu0
        %954 = vmatprep.mubr.f32.mxu0 0.0
        %955 = vmatmul.mubr.f32.gmra.mrb[0].mxu0 %v833
        %v956 = vpop.f32.mrb[0].mxu0
        %v957 = vadd.f32 0.0, %v956
        %v958 = vpop.f32.mrb[0].mxu0
        %959 = vmatprep.mubr.f32.mxu0 0.0
        %960 = vmatmul.mubr.f32.gmra.mrb[0].mxu0 %v836
        %v961 = vpop.f32.mrb[0].mxu0
        %v962 = vadd.f32 0.0, %v961
        %v963 = vpop.f32.mrb[0].mxu0
        %964 = vmatprep.mubr.f32.mxu0 0.0
        %965 = vmatmul.mubr.f32.gmra.mrb[0].mxu0 %v839
        %v966 = vpop.f32.mrb[0].mxu0
        %v967 = vadd.f32 0.0, %v966
        %v968 = vpop.f32.mrb[0].mxu0
        %969 = vmatprep.mubr.f32.mxu0 0.0
        %970 = vmatmul.mubr.f32.gmra.mrb[0].mxu0 %v842
        %v971 = vpop.f32.mrb[0].mxu0
        %v972 = vadd.f32 0.0, %v971
        %v973 = vpop.f32.mrb[0].mxu0
        %974 = vmatprep.mubr.f32.mxu0 0.0
        %975 = vmatmul.mubr.f32.gmra.mrb[0].mxu0 %v845
        %v976 = vpop.f32.mrb[0].mxu0
        %v977 = vadd.f32 0.0, %v976
        %v978 = vpop.f32.mrb[0].mxu0
        %979 = vmatprep.mubr.f32.mxu0 0.0
        %980 = vmatmul.mubr.f32.gmra.mrb[0].mxu0 %v848
        %v981 = vpop.f32.mrb[0].mxu0
        %v982 = vadd.f32 0.0, %v981
        %v983 = vpop.f32.mrb[0].mxu0
        %984 = vmatprep.mubr.f32.mxu0 0.0
        %985 = vmatmul.mubr.f32.gmra.mrb[0].mxu0 %v851
        %v986 = vpop.f32.mrb[0].mxu0
        %v987 = vadd.f32 0.0, %v986
        %v988 = vpop.f32.mrb[0].mxu0
        %989 = vmatprep.mubr.f32.mxu0 0.0
        %990 = vmatmul.mubr.f32.gmra.mrb[0].mxu0 %v854
        %v991 = vpop.f32.mrb[0].mxu0
        %v992 = vadd.f32 0.0, %v991
        %v993 = vpop.f32.mrb[0].mxu0
        %994 = vmatprep.mubr.f32.mxu0 0.0
        %995 = vmatmul.mubr.f32.gmra.mrb[0].mxu0 %v857
        %v996 = vpop.f32.mrb[0].mxu0
        %v997 = vadd.f32 0.0, %v996
        %v998 = vpop.f32.mrb[0].mxu0
        %999 = vmatprep.mubr.f32.mxu0 0.0
        %1000 = vmatmul.mubr.f32.gmra.mrb[0].mxu0 %v860
        %v1001 = vpop.f32.mrb[0].mxu0
        %v1002 = vadd.f32 0.0, %v1001
        %v1003 = vpop.f32.mrb[0].mxu0
        %1004 = vmatprep.mubr.f32.mxu0 0.0
        %1005 = vmatmul.mubr.f32.gmra.mrb[0].mxu0 %v863
        %v1006 = vpop.f32.mrb[0].mxu0
        %v1007 = vadd.f32 0.0, %v1006
        %v1008 = vpop.f32.mrb[0].mxu0
        %1009 = vdwg.mxu0
        %v1010 = vld [vmem:[#allocation2] sm:$0xff]
        %v1011 = vld [vmem:[#allocation2 + $0x8] sm:$0xff]
        %v1012 = vld [vmem:[#allocation2 + $0x10] sm:$0xff]
        %v1014 = vsel %vm816, %v783, 0
        %v1017 = vsel %vm816, %v784, 0
        %v1020 = vsel %vm816, %v785, 0
        %v1023 = vsel %vm816, %v786, 0
        %v1026 = vsel %vm816, %v787, 0
        %v1029 = vsel %vm816, %v788, 0
        %v1032 = vsel %vm816, %v789, 0
        %v1035 = vsel %vm816, %v790, 0
        %v1038 = vsel %vm816, %v791, 0
        %v1041 = vsel %vm816, %v792, 0
        %v1044 = vsel %vm816, %v793, 0
        %v1047 = vsel %vm816, %v794, 0
        %v1050 = vsel %vm816, %v795, 0
        %v1053 = vsel %vm816, %v796, 0
        %v1056 = vsel %vm816, %v797, 0
        %v1059 = vsel %vm816, %v798, 0
        %1061 = vmatprep.subr.mxu0 0.0
        %1062 = vmatpush1.msra.mxu0 %v1010
        %1063 = vmatprep.subr.mxu0 0.0
        %1064 = vmatpush1.msra.mxu0 %v1011
        %1065 = vmatprep.subr.mxu0 0.0
        %1066 = vmatpush1.msra.mxu0 %v1012
        %1067 = vmatprep.subr.mxu0 0.0
        %1068 = vmatpush1.msra.mxu0 0.0
        %1069 = vmatprep.subr.mxu0 0.0
        %1070 = vmatpush1.msra.mxu0 0.0
        %1071 = vmatprep.subr.mxu0 0.0
        %1072 = vmatpush1.msra.mxu0 0.0
        %1073 = vmatprep.subr.mxu0 0.0
        %1074 = vmatpush1.msra.mxu0 0.0
        %1075 = vmatprep.subr.mxu0 0.0
        %1076 = vmatpush1.msra.mxu0 0.0
        %1077 = vmatprep.subr.mxu0 0.0
        %1078 = vmatpush1.msra.mxu0 0.0
        %1079 = vmatprep.subr.mxu0 0.0
        %1080 = vmatpush1.msra.mxu0 0.0
        %1081 = vmatprep.subr.mxu0 0.0
        %1082 = vmatpush1.msra.mxu0 0.0
        %1083 = vmatprep.subr.mxu0 0.0
        %1084 = vmatpush1.msra.mxu0 0.0
        %1085 = vmatprep.subr.mxu0 0.0
        %1086 = vmatpush1.msra.mxu0 0.0
        %1087 = vmatprep.subr.mxu0 0.0
        %1088 = vmatpush1.msra.mxu0 0.0
        %1089 = vmatprep.subr.mxu0 0.0
        %1090 = vmatpush1.msra.mxu0 0.0
        %1091 = vmatprep.subr.mxu0 0.0
        %1092 = vmatpush1.msra.mxu0 0.0
        %1093 = vmatprep.subr.mxu0 0.0
        %1094 = vmatpush1.msra.mxu0 0.0
        %1095 = vmatprep.subr.mxu0 0.0
        %1096 = vmatpush1.msra.mxu0 0.0
        %1097 = vmatprep.subr.mxu0 0.0
        %1098 = vmatpush1.msra.mxu0 0.0
        %1099 = vmatprep.subr.mxu0 0.0
        %1100 = vmatpush1.msra.mxu0 0.0
        %1101 = vmatprep.subr.mxu0 0.0
        %1102 = vmatpush1.msra.mxu0 0.0
        %1103 = vmatprep.subr.mxu0 0.0
        %1104 = vmatpush1.msra.mxu0 0.0
        %1105 = vmatprep.subr.mxu0 0.0
        %1106 = vmatpush1.msra.mxu0 0.0
        %1107 = vmatprep.subr.mxu0 0.0
        %1108 = vmatpush1.msra.mxu0 0.0
        %1109 = vmatprep.subr.mxu0 0.0
        %1110 = vmatpush1.msra.mxu0 0.0
        %1111 = vmatprep.subr.mxu0 0.0
        %1112 = vmatpush1.msra.mxu0 0.0
        %1113 = vmatprep.subr.mxu0 0.0
        %1114 = vmatpush1.msra.mxu0 0.0
        %1115 = vmatprep.subr.mxu0 0.0
        %1116 = vmatpush1.msra.mxu0 0.0
        %1117 = vmatprep.subr.mxu0 0.0
        %1118 = vmatpush1.msra.mxu0 0.0
        %1119 = vmatprep.subr.mxu0 0.0
        %1120 = vmatpush1.msra.mxu0 0.0
        %1121 = vmatprep.subr.mxu0 0.0
        %1122 = vmatpush1.msra.mxu0 0.0
        %1123 = vmatprep.subr.mxu0 0.0
        %1124 = vmatpush1.msra.mxu0 0.0
        %1125 = vmatprep.mubr.f32.mxu0 0.0
        %1126 = vmatmul.mubr.f32.gmra.mrb[0].mxu0 %v1014
        %v1127 = vpop.f32.mrb[0].mxu0
        %v1128 = vadd.f32 0.0, %v1127
        %v1129 = vpop.f32.mrb[0].mxu0
        %1130 = vmatprep.mubr.f32.mxu0 0.0
        %1131 = vmatmul.mubr.f32.gmra.mrb[0].mxu0 %v1017
        %v1132 = vpop.f32.mrb[0].mxu0
        %v1133 = vadd.f32 0.0, %v1132
        %v1134 = vpop.f32.mrb[0].mxu0
        %1135 = vmatprep.mubr.f32.mxu0 0.0
        %1136 = vmatmul.mubr.f32.gmra.mrb[0].mxu0 %v1020
        %v1137 = vpop.f32.mrb[0].mxu0
        %v1138 = vadd.f32 0.0, %v1137
        %v1139 = vpop.f32.mrb[0].mxu0
        %1140 = vmatprep.mubr.f32.mxu0 0.0
        %1141 = vmatmul.mubr.f32.gmra.mrb[0].mxu0 %v1023
        %v1142 = vpop.f32.mrb[0].mxu0
        %v1143 = vadd.f32 0.0, %v1142
        %v1144 = vpop.f32.mrb[0].mxu0
        %1145 = vmatprep.mubr.f32.mxu0 0.0
        %1146 = vmatmul.mubr.f32.gmra.mrb[0].mxu0 %v1026
        %v1147 = vpop.f32.mrb[0].mxu0
        %v1148 = vadd.f32 0.0, %v1147
        %v1149 = vpop.f32.mrb[0].mxu0
        %1150 = vmatprep.mubr.f32.mxu0 0.0
        %1151 = vmatmul.mubr.f32.gmra.mrb[0].mxu0 %v1029
        %v1152 = vpop.f32.mrb[0].mxu0
        %v1153 = vadd.f32 0.0, %v1152
        %v1154 = vpop.f32.mrb[0].mxu0
        %1155 = vmatprep.mubr.f32.mxu0 0.0
        %1156 = vmatmul.mubr.f32.gmra.mrb[0].mxu0 %v1032
        %v1157 = vpop.f32.mrb[0].mxu0
        %v1158 = vadd.f32 0.0, %v1157
        %v1159 = vpop.f32.mrb[0].mxu0
        %1160 = vmatprep.mubr.f32.mxu0 0.0
        %1161 = vmatmul.mubr.f32.gmra.mrb[0].mxu0 %v1035
        %v1162 = vpop.f32.mrb[0].mxu0
        %v1163 = vadd.f32 0.0, %v1162
        %v1164 = vpop.f32.mrb[0].mxu0
        %1165 = vmatprep.mubr.f32.mxu0 0.0
        %1166 = vmatmul.mubr.f32.gmra.mrb[0].mxu0 %v1038
        %v1167 = vpop.f32.mrb[0].mxu0
        %v1168 = vadd.f32 0.0, %v1167
        %v1169 = vpop.f32.mrb[0].mxu0
        %1170 = vmatprep.mubr.f32.mxu0 0.0
        %1171 = vmatmul.mubr.f32.gmra.mrb[0].mxu0 %v1041
        %v1172 = vpop.f32.mrb[0].mxu0
        %v1173 = vadd.f32 0.0, %v1172
        %v1174 = vpop.f32.mrb[0].mxu0
        %1175 = vmatprep.mubr.f32.mxu0 0.0
        %1176 = vmatmul.mubr.f32.gmra.mrb[0].mxu0 %v1044
        %v1177 = vpop.f32.mrb[0].mxu0
        %v1178 = vadd.f32 0.0, %v1177
        %v1179 = vpop.f32.mrb[0].mxu0
        %1180 = vmatprep.mubr.f32.mxu0 0.0
        %1181 = vmatmul.mubr.f32.gmra.mrb[0].mxu0 %v1047
        %v1182 = vpop.f32.mrb[0].mxu0
        %v1183 = vadd.f32 0.0, %v1182
        %v1184 = vpop.f32.mrb[0].mxu0
        %1185 = vmatprep.mubr.f32.mxu0 0.0
        %1186 = vmatmul.mubr.f32.gmra.mrb[0].mxu0 %v1050
        %v1187 = vpop.f32.mrb[0].mxu0
        %v1188 = vadd.f32 0.0, %v1187
        %v1189 = vpop.f32.mrb[0].mxu0
        %1190 = vmatprep.mubr.f32.mxu0 0.0
        %1191 = vmatmul.mubr.f32.gmra.mrb[0].mxu0 %v1053
        %v1192 = vpop.f32.mrb[0].mxu0
        %v1193 = vadd.f32 0.0, %v1192
        %v1194 = vpop.f32.mrb[0].mxu0
        %1195 = vmatprep.mubr.f32.mxu0 0.0
        %1196 = vmatmul.mubr.f32.gmra.mrb[0].mxu0 %v1056
        %v1197 = vpop.f32.mrb[0].mxu0
        %v1198 = vadd.f32 0.0, %v1197
        %v1199 = vpop.f32.mrb[0].mxu0
        %1200 = vmatprep.mubr.f32.mxu0 0.0
        %1201 = vmatmul.mubr.f32.gmra.mrb[0].mxu0 %v1059
        %v1202 = vpop.f32.mrb[0].mxu0
        %v1203 = vadd.f32 0.0, %v1202
        %v1204 = vpop.f32.mrb[0].mxu0
        %1205 = vdwg.mxu0
        %v1206 = vld [vmem:[%s451] sm:$0xff]
        %v1207 = vld [vmem:[%s451 + $0x8] sm:$0xff]
        %v1208 = vld [vmem:[%s451 + $0x10] sm:$0xff]
        %v1209 = vld [vmem:[%s451 + $0x18] sm:$0xff]
        %v1210 = vld [vmem:[%s451 + $0x20] sm:$0xff]
        %v1211 = vld [vmem:[%s451 + $0x28] sm:$0xff]
        %v1212 = vld [vmem:[%s451 + $0x30] sm:$0xff]
        %v1213 = vld [vmem:[%s451 + $0x38] sm:$0xff]
        %v1214 = vld [vmem:[%s451 + $0x40] sm:$0xff]
        %v1215 = vld [vmem:[%s451 + $0x48] sm:$0xff]
        %v1216 = vld [vmem:[%s451 + $0x50] sm:$0xff]
        %v1217 = vld [vmem:[%s451 + $0x58] sm:$0xff]
        %v1218 = vld [vmem:[%s451 + $0x60] sm:$0xff]
        %v1219 = vld [vmem:[%s451 + $0x68] sm:$0xff]
        %v1220 = vld [vmem:[%s451 + $0x70] sm:$0xff]
        %v1221 = vld [vmem:[%s451 + $0x78] sm:$0xff]
        %v1222 = vld [vmem:[%s3] sm:$0xff]
        %v1223 = vld [vmem:[%s4] sm:$0x1]
        %v1225 = vlaneseq
        %v1226 = vshrl.u32 %v1225, 7
        %v1227 = vsub.s32 0, %v1226
        %v1228 = vrot.slane %v1223, %v1227
        %vm1230 = vcmask 64512
        %v1232 = vsel %vm1230, %v1206, 0
        %v1235 = vsel %vm1230, %v1207, 0
        %v1238 = vsel %vm1230, %v1208, 0
        %v1241 = vsel %vm1230, %v1209, 0
        %v1244 = vsel %vm1230, %v1210, 0
        %v1247 = vsel %vm1230, %v1211, 0
        %v1250 = vsel %vm1230, %v1212, 0
        %v1253 = vsel %vm1230, %v1213, 0
        %v1256 = vsel %vm1230, %v1214, 0
        %v1259 = vsel %vm1230, %v1215, 0
        %v1262 = vsel %vm1230, %v1216, 0
        %v1265 = vsel %vm1230, %v1217, 0
        %v1268 = vsel %vm1230, %v1218, 0
        %v1271 = vsel %vm1230, %v1219, 0
        %v1274 = vsel %vm1230, %v1220, 0
        %v1277 = vsel %vm1230, %v1221, 0
        %1279 = vmatprep.subr.mxu0 0.0
        %1280 = vmatpush1.msra.mxu0 %v1222
        %1281 = vmatprep.subr.mxu0 0.0
        %1282 = vmatpush1.msra.mxu0 0.0
        %1283 = vmatprep.subr.mxu0 0.0
        %1284 = vmatpush1.msra.mxu0 0.0
        %1285 = vmatprep.subr.mxu0 0.0
        %1286 = vmatpush1.msra.mxu0 0.0
        %1287 = vmatprep.subr.mxu0 0.0
        %1288 = vmatpush1.msra.mxu0 0.0
        %1289 = vmatprep.subr.mxu0 0.0
        %1290 = vmatpush1.msra.mxu0 0.0
        %1291 = vmatprep.subr.mxu0 0.0
        %1292 = vmatpush1.msra.mxu0 0.0
        %1293 = vmatprep.subr.mxu0 0.0
        %1294 = vmatpush1.msra.mxu0 0.0
        %1295 = vmatprep.subr.mxu0 0.0
        %1296 = vmatpush1.msra.mxu0 0.0
        %1297 = vmatprep.subr.mxu0 0.0
        %1298 = vmatpush1.msra.mxu0 0.0
        %1299 = vmatprep.subr.mxu0 0.0
        %1300 = vmatpush1.msra.mxu0 0.0
        %1301 = vmatprep.subr.mxu0 0.0
        %1302 = vmatpush1.msra.mxu0 0.0
        %1303 = vmatprep.subr.mxu0 0.0
        %1304 = vmatpush1.msra.mxu0 0.0
        %1305 = vmatprep.subr.mxu0 0.0
        %1306 = vmatpush1.msra.mxu0 0.0
        %1307 = vmatprep.subr.mxu0 0.0
        %1308 = vmatpush1.msra.mxu0 0.0
        %1309 = vmatprep.subr.mxu0 0.0
        %1310 = vmatpush1.msra.mxu0 0.0
        %1311 = vmatprep.subr.mxu0 0.0
        %1312 = vmatpush1.msra.mxu0 0.0
        %1313 = vmatprep.subr.mxu0 0.0
        %1314 = vmatpush1.msra.mxu0 0.0
        %1315 = vmatprep.subr.mxu0 0.0
        %1316 = vmatpush1.msra.mxu0 0.0
        %1317 = vmatprep.subr.mxu0 0.0
        %1318 = vmatpush1.msra.mxu0 0.0
        %1319 = vmatprep.subr.mxu0 0.0
        %1320 = vmatpush1.msra.mxu0 0.0
        %1321 = vmatprep.subr.mxu0 0.0
        %1322 = vmatpush1.msra.mxu0 0.0
        %1323 = vmatprep.subr.mxu0 0.0
        %1324 = vmatpush1.msra.mxu0 0.0
        %1325 = vmatprep.subr.mxu0 0.0
        %1326 = vmatpush1.msra.mxu0 0.0
        %1327 = vmatprep.subr.mxu0 0.0
        %1328 = vmatpush1.msra.mxu0 0.0
        %1329 = vmatprep.subr.mxu0 0.0
        %1330 = vmatpush1.msra.mxu0 0.0
        %1331 = vmatprep.subr.mxu0 0.0
        %1332 = vmatpush1.msra.mxu0 0.0
        %1333 = vmatprep.subr.mxu0 0.0
        %1334 = vmatpush1.msra.mxu0 0.0
        %1335 = vmatprep.subr.mxu0 0.0
        %1336 = vmatpush1.msra.mxu0 0.0
        %1337 = vmatprep.subr.mxu0 0.0
        %1338 = vmatpush1.msra.mxu0 0.0
        %1339 = vmatprep.subr.mxu0 0.0
        %1340 = vmatpush1.msra.mxu0 0.0
        %1341 = vmatprep.subr.mxu0 0.0
        %1342 = vmatpush1.msra.mxu0 0.0
        %1343 = vmatprep.mubr.f32.mxu0 0.0
        %1344 = vmatmul.mubr.f32.gmra.mrb[0].mxu0 %v1232
        %v1345 = vpop.f32.mrb[0].mxu0
        %v1346 = vadd.f32 %v1228, %v1345
        %v1347 = vpop.f32.mrb[0].mxu0
        %1348 = vmatprep.mubr.f32.mxu0 0.0
        %1349 = vmatmul.mubr.f32.gmra.mrb[0].mxu0 %v1235
        %v1350 = vpop.f32.mrb[0].mxu0
        %v1351 = vadd.f32 %v1228, %v1350
        %v1352 = vpop.f32.mrb[0].mxu0
        %1353 = vmatprep.mubr.f32.mxu0 0.0
        %1354 = vmatmul.mubr.f32.gmra.mrb[0].mxu0 %v1238
        %v1355 = vpop.f32.mrb[0].mxu0
        %v1356 = vadd.f32 %v1228, %v1355
        %v1357 = vpop.f32.mrb[0].mxu0
        %1358 = vmatprep.mubr.f32.mxu0 0.0
        %1359 = vmatmul.mubr.f32.gmra.mrb[0].mxu0 %v1241
        %v1360 = vpop.f32.mrb[0].mxu0
        %v1361 = vadd.f32 %v1228, %v1360
        %v1362 = vpop.f32.mrb[0].mxu0
        %1363 = vmatprep.mubr.f32.mxu0 0.0
        %1364 = vmatmul.mubr.f32.gmra.mrb[0].mxu0 %v1244
        %v1365 = vpop.f32.mrb[0].mxu0
        %v1366 = vadd.f32 %v1228, %v1365
        %v1367 = vpop.f32.mrb[0].mxu0
        %1368 = vmatprep.mubr.f32.mxu0 0.0
        %1369 = vmatmul.mubr.f32.gmra.mrb[0].mxu0 %v1247
        %v1370 = vpop.f32.mrb[0].mxu0
        %v1371 = vadd.f32 %v1228, %v1370
        %v1372 = vpop.f32.mrb[0].mxu0
        %1373 = vmatprep.mubr.f32.mxu0 0.0
        %1374 = vmatmul.mubr.f32.gmra.mrb[0].mxu0 %v1250
        %v1375 = vpop.f32.mrb[0].mxu0
        %v1376 = vadd.f32 %v1228, %v1375
        %v1377 = vpop.f32.mrb[0].mxu0
        %1378 = vmatprep.mubr.f32.mxu0 0.0
        %1379 = vmatmul.mubr.f32.gmra.mrb[0].mxu0 %v1253
        %v1380 = vpop.f32.mrb[0].mxu0
        %v1381 = vadd.f32 %v1228, %v1380
        %v1382 = vpop.f32.mrb[0].mxu0
        %1383 = vmatprep.mubr.f32.mxu0 0.0
        %1384 = vmatmul.mubr.f32.gmra.mrb[0].mxu0 %v1256
        %v1385 = vpop.f32.mrb[0].mxu0
        %v1386 = vadd.f32 %v1228, %v1385
        %v1387 = vpop.f32.mrb[0].mxu0
        %1388 = vmatprep.mubr.f32.mxu0 0.0
        %1389 = vmatmul.mubr.f32.gmra.mrb[0].mxu0 %v1259
        %v1390 = vpop.f32.mrb[0].mxu0
        %v1391 = vadd.f32 %v1228, %v1390
        %v1392 = vpop.f32.mrb[0].mxu0
        %1393 = vmatprep.mubr.f32.mxu0 0.0
        %1394 = vmatmul.mubr.f32.gmra.mrb[0].mxu0 %v1262
        %v1395 = vpop.f32.mrb[0].mxu0
        %v1396 = vadd.f32 %v1228, %v1395
        %v1397 = vpop.f32.mrb[0].mxu0
        %1398 = vmatprep.mubr.f32.mxu0 0.0
        %1399 = vmatmul.mubr.f32.gmra.mrb[0].mxu0 %v1265
        %v1400 = vpop.f32.mrb[0].mxu0
        %v1401 = vadd.f32 %v1228, %v1400
        %v1402 = vpop.f32.mrb[0].mxu0
        %1403 = vmatprep.mubr.f32.mxu0 0.0
        %1404 = vmatmul.mubr.f32.gmra.mrb[0].mxu0 %v1268
        %v1405 = vpop.f32.mrb[0].mxu0
        %v1406 = vadd.f32 %v1228, %v1405
        %v1407 = vpop.f32.mrb[0].mxu0
        %1408 = vmatprep.mubr.f32.mxu0 0.0
        %1409 = vmatmul.mubr.f32.gmra.mrb[0].mxu0 %v1271
        %v1410 = vpop.f32.mrb[0].mxu0
        %v1411 = vadd.f32 %v1228, %v1410
        %v1412 = vpop.f32.mrb[0].mxu0
        %1413 = vmatprep.mubr.f32.mxu0 0.0
        %1414 = vmatmul.mubr.f32.gmra.mrb[0].mxu0 %v1274
        %v1415 = vpop.f32.mrb[0].mxu0
        %v1416 = vadd.f32 %v1228, %v1415
        %v1417 = vpop.f32.mrb[0].mxu0
        %1418 = vmatprep.mubr.f32.mxu0 0.0
        %1419 = vmatmul.mubr.f32.gmra.mrb[0].mxu0 %v1277
        %v1420 = vpop.f32.mrb[0].mxu0
        %v1421 = vadd.f32 %v1228, %v1420
        %v1422 = vpop.f32.mrb[0].mxu0
        %1423 = vdwg.mxu0
        %v1424 = vmul.f32 %v1128, %v932
        %v1425 = vmul.f32 %v1133, %v937
        %v1426 = vmul.f32 %v1138, %v942
        %v1427 = vmul.f32 %v1143, %v947
        %v1428 = vmul.f32 %v1148, %v952
        %v1429 = vmul.f32 %v1153, %v957
        %v1430 = vmul.f32 %v1158, %v962
        %v1431 = vmul.f32 %v1163, %v967
        %v1432 = vmul.f32 %v1168, %v972
        %v1433 = vmul.f32 %v1173, %v977
        %v1434 = vmul.f32 %v1178, %v982
        %v1435 = vmul.f32 %v1183, %v987
        %v1436 = vmul.f32 %v1188, %v992
        %v1437 = vmul.f32 %v1193, %v997
        %v1438 = vmul.f32 %v1198, %v1002
        %v1439 = vmul.f32 %v1203, %v1007
        %v1440 = vmul.f32 %v1424, %v1346
        %v1441 = vmul.f32 %v1425, %v1351
        %v1442 = vmul.f32 %v1426, %v1356
        %v1443 = vmul.f32 %v1427, %v1361
        %v1444 = vmul.f32 %v1428, %v1366
        %v1445 = vmul.f32 %v1429, %v1371
        %v1446 = vmul.f32 %v1430, %v1376
        %v1447 = vmul.f32 %v1431, %v1381
        %v1448 = vmul.f32 %v1432, %v1386
        %v1449 = vmul.f32 %v1433, %v1391
        %v1450 = vmul.f32 %v1434, %v1396
        %v1451 = vmul.f32 %v1435, %v1401
        %v1452 = vmul.f32 %v1436, %v1406
        %v1453 = vmul.f32 %v1437, %v1411
        %v1454 = vmul.f32 %v1438, %v1416
        %v1455 = vmul.f32 %v1439, %v1421
        %v1456 = vld [vmem:[%s9] sm:$0xff]
        %v1457 = vld [vmem:[%s9 + $0x8] sm:$0xff]
        %v1458 = vld [vmem:[%s9 + $0x10] sm:$0xff]
        %v1459 = vld [vmem:[%s9 + $0x18] sm:$0xff]
        %vm1460 = vcmask 261120
        %v1462 = vsel %vm1460, %v1440, 0
        %v1465 = vsel %vm1460, %v1441, 0
        %v1468 = vsel %vm1460, %v1442, 0
        %v1471 = vsel %vm1460, %v1443, 0
        %v1474 = vsel %vm1460, %v1444, 0
        %v1477 = vsel %vm1460, %v1445, 0
        %v1480 = vsel %vm1460, %v1446, 0
        %v1483 = vsel %vm1460, %v1447, 0
        %v1486 = vsel %vm1460, %v1448, 0
        %v1489 = vsel %vm1460, %v1449, 0
        %v1492 = vsel %vm1460, %v1450, 0
        %v1495 = vsel %vm1460, %v1451, 0
        %v1498 = vsel %vm1460, %v1452, 0
        %v1501 = vsel %vm1460, %v1453, 0
        %v1504 = vsel %vm1460, %v1454, 0
        %v1507 = vsel %vm1460, %v1455, 0
        %1509 = vmatprep.subr.mxu0 0.0
        %1510 = vmatpush1.msra.mxu0 %v1456
        %1511 = vmatprep.subr.mxu0 0.0
        %1512 = vmatpush1.msra.mxu0 %v1457
        %1513 = vmatprep.subr.mxu0 0.0
        %1514 = vmatpush1.msra.mxu0 %v1458
        %1515 = vmatprep.subr.mxu0 0.0
        %1516 = vmatpush1.msra.mxu0 %v1459
        %1517 = vmatprep.subr.mxu0 0.0
        %1518 = vmatpush1.msra.mxu0 0.0
        %1519 = vmatprep.subr.mxu0 0.0
        %1520 = vmatpush1.msra.mxu0 0.0
        %1521 = vmatprep.subr.mxu0 0.0
        %1522 = vmatpush1.msra.mxu0 0.0
        %1523 = vmatprep.subr.mxu0 0.0
        %1524 = vmatpush1.msra.mxu0 0.0
        %1525 = vmatprep.subr.mxu0 0.0
        %1526 = vmatpush1.msra.mxu0 0.0
        %1527 = vmatprep.subr.mxu0 0.0
        %1528 = vmatpush1.msra.mxu0 0.0
        %1529 = vmatprep.subr.mxu0 0.0
        %1530 = vmatpush1.msra.mxu0 0.0
        %1531 = vmatprep.subr.mxu0 0.0
        %1532 = vmatpush1.msra.mxu0 0.0
        %1533 = vmatprep.subr.mxu0 0.0
        %1534 = vmatpush1.msra.mxu0 0.0
        %1535 = vmatprep.subr.mxu0 0.0
        %1536 = vmatpush1.msra.mxu0 0.0
        %1537 = vmatprep.subr.mxu0 0.0
        %1538 = vmatpush1.msra.mxu0 0.0
        %1539 = vmatprep.subr.mxu0 0.0
        %1540 = vmatpush1.msra.mxu0 0.0
        %1541 = vmatprep.subr.mxu0 0.0
        %1542 = vmatpush1.msra.mxu0 0.0
        %1543 = vmatprep.subr.mxu0 0.0
        %1544 = vmatpush1.msra.mxu0 0.0
        %1545 = vmatprep.subr.mxu0 0.0
        %1546 = vmatpush1.msra.mxu0 0.0
        %1547 = vmatprep.subr.mxu0 0.0
        %1548 = vmatpush1.msra.mxu0 0.0
        %1549 = vmatprep.subr.mxu0 0.0
        %1550 = vmatpush1.msra.mxu0 0.0
        %1551 = vmatprep.subr.mxu0 0.0
        %1552 = vmatpush1.msra.mxu0 0.0
        %1553 = vmatprep.subr.mxu0 0.0
        %1554 = vmatpush1.msra.mxu0 0.0
        %1555 = vmatprep.subr.mxu0 0.0
        %1556 = vmatpush1.msra.mxu0 0.0
        %1557 = vmatprep.subr.mxu0 0.0
        %1558 = vmatpush1.msra.mxu0 0.0
        %1559 = vmatprep.subr.mxu0 0.0
        %1560 = vmatpush1.msra.mxu0 0.0
        %1561 = vmatprep.subr.mxu0 0.0
        %1562 = vmatpush1.msra.mxu0 0.0
        %1563 = vmatprep.subr.mxu0 0.0
        %1564 = vmatpush1.msra.mxu0 0.0
        %1565 = vmatprep.subr.mxu0 0.0
        %1566 = vmatpush1.msra.mxu0 0.0
        %1567 = vmatprep.subr.mxu0 0.0
        %1568 = vmatpush1.msra.mxu0 0.0
        %1569 = vmatprep.subr.mxu0 0.0
        %1570 = vmatpush1.msra.mxu0 0.0
        %1571 = vmatprep.subr.mxu0 0.0
        %1572 = vmatpush1.msra.mxu0 0.0
        %1573 = vmatprep.mubr.f32.mxu0 0.0
        %1574 = vmatmul.mubr.f32.gmra.mrb[0].mxu0 %v1462
        %v1575 = vpop.f32.mrb[0].mxu0
        %v1576 = vadd.f32 0.0, %v1575
        %v1577 = vpop.f32.mrb[0].mxu0
        %1578 = vmatprep.mubr.f32.mxu0 0.0
        %1579 = vmatmul.mubr.f32.gmra.mrb[0].mxu0 %v1465
        %v1580 = vpop.f32.mrb[0].mxu0
        %v1581 = vadd.f32 0.0, %v1580
        %v1582 = vpop.f32.mrb[0].mxu0
        %1583 = vmatprep.mubr.f32.mxu0 0.0
        %1584 = vmatmul.mubr.f32.gmra.mrb[0].mxu0 %v1468
        %v1585 = vpop.f32.mrb[0].mxu0
        %v1586 = vadd.f32 0.0, %v1585
        %v1587 = vpop.f32.mrb[0].mxu0
        %1588 = vmatprep.mubr.f32.mxu0 0.0
        %1589 = vmatmul.mubr.f32.gmra.mrb[0].mxu0 %v1471
        %v1590 = vpop.f32.mrb[0].mxu0
        %v1591 = vadd.f32 0.0, %v1590
        %v1592 = vpop.f32.mrb[0].mxu0
        %1593 = vmatprep.mubr.f32.mxu0 0.0
        %1594 = vmatmul.mubr.f32.gmra.mrb[0].mxu0 %v1474
        %v1595 = vpop.f32.mrb[0].mxu0
        %v1596 = vadd.f32 0.0, %v1595
        %v1597 = vpop.f32.mrb[0].mxu0
        %1598 = vmatprep.mubr.f32.mxu0 0.0
        %1599 = vmatmul.mubr.f32.gmra.mrb[0].mxu0 %v1477
        %v1600 = vpop.f32.mrb[0].mxu0
        %v1601 = vadd.f32 0.0, %v1600
        %v1602 = vpop.f32.mrb[0].mxu0
        %1603 = vmatprep.mubr.f32.mxu0 0.0
        %1604 = vmatmul.mubr.f32.gmra.mrb[0].mxu0 %v1480
        %v1605 = vpop.f32.mrb[0].mxu0
        %v1606 = vadd.f32 0.0, %v1605
        %v1607 = vpop.f32.mrb[0].mxu0
        %1608 = vmatprep.mubr.f32.mxu0 0.0
        %1609 = vmatmul.mubr.f32.gmra.mrb[0].mxu0 %v1483
        %v1610 = vpop.f32.mrb[0].mxu0
        %v1611 = vadd.f32 0.0, %v1610
        %v1612 = vpop.f32.mrb[0].mxu0
        %1613 = vmatprep.mubr.f32.mxu0 0.0
        %1614 = vmatmul.mubr.f32.gmra.mrb[0].mxu0 %v1486
        %v1615 = vpop.f32.mrb[0].mxu0
        %v1616 = vadd.f32 0.0, %v1615
        %v1617 = vpop.f32.mrb[0].mxu0
        %1618 = vmatprep.mubr.f32.mxu0 0.0
        %1619 = vmatmul.mubr.f32.gmra.mrb[0].mxu0 %v1489
        %v1620 = vpop.f32.mrb[0].mxu0
        %v1621 = vadd.f32 0.0, %v1620
        %v1622 = vpop.f32.mrb[0].mxu0
        %1623 = vmatprep.mubr.f32.mxu0 0.0
        %1624 = vmatmul.mubr.f32.gmra.mrb[0].mxu0 %v1492
        %v1625 = vpop.f32.mrb[0].mxu0
        %v1626 = vadd.f32 0.0, %v1625
        %v1627 = vpop.f32.mrb[0].mxu0
        %1628 = vmatprep.mubr.f32.mxu0 0.0
        %1629 = vmatmul.mubr.f32.gmra.mrb[0].mxu0 %v1495
        %v1630 = vpop.f32.mrb[0].mxu0
        %v1631 = vadd.f32 0.0, %v1630
        %v1632 = vpop.f32.mrb[0].mxu0
        %1633 = vmatprep.mubr.f32.mxu0 0.0
        %1634 = vmatmul.mubr.f32.gmra.mrb[0].mxu0 %v1498
        %v1635 = vpop.f32.mrb[0].mxu0
        %v1636 = vadd.f32 0.0, %v1635
        %v1637 = vpop.f32.mrb[0].mxu0
        %1638 = vmatprep.mubr.f32.mxu0 0.0
        %1639 = vmatmul.mubr.f32.gmra.mrb[0].mxu0 %v1501
        %v1640 = vpop.f32.mrb[0].mxu0
        %v1641 = vadd.f32 0.0, %v1640
        %v1642 = vpop.f32.mrb[0].mxu0
        %1643 = vmatprep.mubr.f32.mxu0 0.0
        %1644 = vmatmul.mubr.f32.gmra.mrb[0].mxu0 %v1504
        %v1645 = vpop.f32.mrb[0].mxu0
        %v1646 = vadd.f32 0.0, %v1645
        %v1647 = vpop.f32.mrb[0].mxu0
        %1648 = vmatprep.mubr.f32.mxu0 0.0
        %1649 = vmatmul.mubr.f32.gmra.mrb[0].mxu0 %v1507
        %v1650 = vpop.f32.mrb[0].mxu0
        %v1651 = vadd.f32 0.0, %v1650
        %v1652 = vpop.f32.mrb[0].mxu0
        %1653 = vdwg.mxu0
        %vm1654 = vcmask 31744
        %1655 = vst.msk [vmem:[%s472] sm:$0xff] %vm1654, %v1576
        %1656 = vst.msk [vmem:[%s472 + $0x8] sm:$0xff] %vm1654, %v1581
        %1657 = vst.msk [vmem:[%s472 + $0x10] sm:$0xff] %vm1654, %v1586
        %1658 = vst.msk [vmem:[%s472 + $0x18] sm:$0xff] %vm1654, %v1591
        %1659 = vst.msk [vmem:[%s472 + $0x20] sm:$0xff] %vm1654, %v1596
        %1660 = vst.msk [vmem:[%s472 + $0x28] sm:$0xff] %vm1654, %v1601
        %1661 = vst.msk [vmem:[%s472 + $0x30] sm:$0xff] %vm1654, %v1606
        %1662 = vst.msk [vmem:[%s472 + $0x38] sm:$0xff] %vm1654, %v1611
        %1663 = vst.msk [vmem:[%s472 + $0x40] sm:$0xff] %vm1654, %v1616
        %1664 = vst.msk [vmem:[%s472 + $0x48] sm:$0xff] %vm1654, %v1621
        %1665 = vst.msk [vmem:[%s472 + $0x50] sm:$0xff] %vm1654, %v1626
        %1666 = vst.msk [vmem:[%s472 + $0x58] sm:$0xff] %vm1654, %v1631
        %1667 = vst.msk [vmem:[%s472 + $0x60] sm:$0xff] %vm1654, %v1636
        %1668 = vst.msk [vmem:[%s472 + $0x68] sm:$0xff] %vm1654, %v1641
        %1669 = vst.msk [vmem:[%s472 + $0x70] sm:$0xff] %vm1654, %v1646
        %1670 = vst.msk [vmem:[%s472 + $0x78] sm:$0xff] %vm1654, %v1651
        %v1671 = vmax.f32 %v1576, -5.0
        %v1672 = vmax.f32 %v1581, -5.0
        %v1673 = vmax.f32 %v1586, -5.0
        %v1674 = vmax.f32 %v1591, -5.0
        %v1675 = vmax.f32 %v1596, -5.0
        %v1676 = vmax.f32 %v1601, -5.0
        %v1677 = vmax.f32 %v1606, -5.0
        %v1678 = vmax.f32 %v1611, -5.0
        %v1679 = vmax.f32 %v1616, -5.0
        %v1680 = vmax.f32 %v1621, -5.0
        %v1681 = vmax.f32 %v1626, -5.0
        %v1682 = vmax.f32 %v1631, -5.0
        %v1683 = vmax.f32 %v1636, -5.0
        %v1684 = vmax.f32 %v1641, -5.0
        %v1685 = vmax.f32 %v1646, -5.0
        %v1686 = vmax.f32 %v1651, -5.0
        %v1687 = vmin.f32 %v1671, 5.0
        %v1688 = vmin.f32 %v1672, 5.0
        %v1689 = vmin.f32 %v1673, 5.0
        %v1690 = vmin.f32 %v1674, 5.0
        %v1691 = vmin.f32 %v1675, 5.0
        %v1692 = vmin.f32 %v1676, 5.0
        %v1693 = vmin.f32 %v1677, 5.0
        %v1694 = vmin.f32 %v1678, 5.0
        %v1695 = vmin.f32 %v1679, 5.0
        %v1696 = vmin.f32 %v1680, 5.0
        %v1697 = vmin.f32 %v1681, 5.0
        %v1698 = vmin.f32 %v1682, 5.0
        %v1699 = vmin.f32 %v1683, 5.0
        %v1700 = vmin.f32 %v1684, 5.0
        %v1701 = vmin.f32 %v1685, 5.0
        %v1702 = vmin.f32 %v1686, 5.0
        %v1703 = vmul.f32 %v1687, 1.442695
        %v1704 = vpow.pop %v1703
        %v1705 = vmul.f32 %v1688, 1.442695
        %v1706 = vpow.pop %v1705
        %v1707 = vmul.f32 %v1689, 1.442695
        %v1708 = vpow.pop %v1707
        %v1709 = vmul.f32 %v1690, 1.442695
        %v1710 = vpow.pop %v1709
        %v1711 = vmul.f32 %v1691, 1.442695
        %v1712 = vpow.pop %v1711
        %v1713 = vmul.f32 %v1692, 1.442695
        %v1714 = vpow.pop %v1713
        %v1715 = vmul.f32 %v1693, 1.442695
        %v1716 = vpow.pop %v1715
        %v1717 = vmul.f32 %v1694, 1.442695
        %v1718 = vpow.pop %v1717
        %v1719 = vmul.f32 %v1695, 1.442695
        %v1720 = vpow.pop %v1719
        %v1721 = vmul.f32 %v1696, 1.442695
        %v1722 = vpow.pop %v1721
        %v1723 = vmul.f32 %v1697, 1.442695
        %v1724 = vpow.pop %v1723
        %v1725 = vmul.f32 %v1698, 1.442695
        %v1726 = vpow.pop %v1725
        %v1727 = vmul.f32 %v1699, 1.442695
        %v1728 = vpow.pop %v1727
        %v1729 = vmul.f32 %v1700, 1.442695
        %v1730 = vpow.pop %v1729
        %v1731 = vmul.f32 %v1701, 1.442695
        %v1732 = vpow.pop %v1731
        %v1733 = vmul.f32 %v1702, 1.442695
        %v1734 = vpow.pop %v1733
        %v1735 = vld [vmem:[%s10] sm:$0xf]
        %v1737 = vsel %vm1654, %v1704, 0
        %v1740 = vsel %vm1654, %v1706, 0
        %v1743 = vsel %vm1654, %v1708, 0
        %v1746 = vsel %vm1654, %v1710, 0
        %v1749 = vsel %vm1654, %v1712, 0
        %v1752 = vsel %vm1654, %v1714, 0
        %v1755 = vsel %vm1654, %v1716, 0
        %v1758 = vsel %vm1654, %v1718, 0
        %v1761 = vsel %vm1654, %v1720, 0
        %v1764 = vsel %vm1654, %v1722, 0
        %v1767 = vsel %vm1654, %v1724, 0
        %v1770 = vsel %vm1654, %v1726, 0
        %v1773 = vsel %vm1654, %v1728, 0
        %v1776 = vsel %vm1654, %v1730, 0
        %v1779 = vsel %vm1654, %v1732, 0
        %v1782 = vsel %vm1654, %v1734, 0
        %vm1784 = vcmask 1043456
        %v1786 = vsel %vm1784, %v1735, 0
        %1788 = vmatprep.subr.mxu0 0.0
        %1789 = vmatpush1.msra.mxu0 %v1786
        %1790 = vmatprep.subr.mxu0 0.0
        %1791 = vmatpush1.msra.mxu0 0.0
        %1792 = vmatprep.subr.mxu0 0.0
        %1793 = vmatpush1.msra.mxu0 0.0
        %1794 = vmatprep.subr.mxu0 0.0
        %1795 = vmatpush1.msra.mxu0 0.0
        %1796 = vmatprep.subr.mxu0 0.0
        %1797 = vmatpush1.msra.mxu0 0.0
        %1798 = vmatprep.subr.mxu0 0.0
        %1799 = vmatpush1.msra.mxu0 0.0
        %1800 = vmatprep.subr.mxu0 0.0
        %1801 = vmatpush1.msra.mxu0 0.0
        %1802 = vmatprep.subr.mxu0 0.0
        %1803 = vmatpush1.msra.mxu0 0.0
        %1804 = vmatprep.subr.mxu0 0.0
        %1805 = vmatpush1.msra.mxu0 0.0
        %1806 = vmatprep.subr.mxu0 0.0
        %1807 = vmatpush1.msra.mxu0 0.0
        %1808 = vmatprep.subr.mxu0 0.0
        %1809 = vmatpush1.msra.mxu0 0.0
        %1810 = vmatprep.subr.mxu0 0.0
        %1811 = vmatpush1.msra.mxu0 0.0
        %1812 = vmatprep.subr.mxu0 0.0
        %1813 = vmatpush1.msra.mxu0 0.0
        %1814 = vmatprep.subr.mxu0 0.0
        %1815 = vmatpush1.msra.mxu0 0.0
        %1816 = vmatprep.subr.mxu0 0.0
        %1817 = vmatpush1.msra.mxu0 0.0
        %1818 = vmatprep.subr.mxu0 0.0
        %1819 = vmatpush1.msra.mxu0 0.0
        %1820 = vmatprep.subr.mxu0 0.0
        %1821 = vmatpush1.msra.mxu0 0.0
        %1822 = vmatprep.subr.mxu0 0.0
        %1823 = vmatpush1.msra.mxu0 0.0
        %1824 = vmatprep.subr.mxu0 0.0
        %1825 = vmatpush1.msra.mxu0 0.0
        %1826 = vmatprep.subr.mxu0 0.0
        %1827 = vmatpush1.msra.mxu0 0.0
        %1828 = vmatprep.subr.mxu0 0.0
        %1829 = vmatpush1.msra.mxu0 0.0
        %1830 = vmatprep.subr.mxu0 0.0
        %1831 = vmatpush1.msra.mxu0 0.0
        %1832 = vmatprep.subr.mxu0 0.0
        %1833 = vmatpush1.msra.mxu0 0.0
        %1834 = vmatprep.subr.mxu0 0.0
        %1835 = vmatpush1.msra.mxu0 0.0
        %1836 = vmatprep.subr.mxu0 0.0
        %1837 = vmatpush1.msra.mxu0 0.0
        %1838 = vmatprep.subr.mxu0 0.0
        %1839 = vmatpush1.msra.mxu0 0.0
        %1840 = vmatprep.subr.mxu0 0.0
        %1841 = vmatpush1.msra.mxu0 0.0
        %1842 = vmatprep.subr.mxu0 0.0
        %1843 = vmatpush1.msra.mxu0 0.0
        %1844 = vmatprep.subr.mxu0 0.0
        %1845 = vmatpush1.msra.mxu0 0.0
        %1846 = vmatprep.subr.mxu0 0.0
        %1847 = vmatpush1.msra.mxu0 0.0
        %1848 = vmatprep.subr.mxu0 0.0
        %1849 = vmatpush1.msra.mxu0 0.0
        %1850 = vmatprep.subr.mxu0 0.0
        %1851 = vmatpush1.msra.mxu0 0.0
        %1852 = vmatprep.mubr.f32.mxu0 0.0
        %1853 = vmatmul.mubr.f32.gmra.mrb[0].mxu0 %v1737
        %v1854 = vpop.f32.mrb[0].mxu0
        %v1855 = vadd.f32 0.0, %v1854
        %v1856 = vpop.f32.mrb[0].mxu0
        %1857 = vmatprep.mubr.f32.mxu0 0.0
        %1858 = vmatmul.mubr.f32.gmra.mrb[0].mxu0 %v1740
        %v1859 = vpop.f32.mrb[0].mxu0
        %v1860 = vadd.f32 0.0, %v1859
        %v1861 = vpop.f32.mrb[0].mxu0
        %1862 = vmatprep.mubr.f32.mxu0 0.0
        %1863 = vmatmul.mubr.f32.gmra.mrb[0].mxu0 %v1743
        %v1864 = vpop.f32.mrb[0].mxu0
        %v1865 = vadd.f32 0.0, %v1864
        %v1866 = vpop.f32.mrb[0].mxu0
        %1867 = vmatprep.mubr.f32.mxu0 0.0
        %1868 = vmatmul.mubr.f32.gmra.mrb[0].mxu0 %v1746
        %v1869 = vpop.f32.mrb[0].mxu0
        %v1870 = vadd.f32 0.0, %v1869
        %v1871 = vpop.f32.mrb[0].mxu0
        %1872 = vmatprep.mubr.f32.mxu0 0.0
        %1873 = vmatmul.mubr.f32.gmra.mrb[0].mxu0 %v1749
        %v1874 = vpop.f32.mrb[0].mxu0
        %v1875 = vadd.f32 0.0, %v1874
        %v1876 = vpop.f32.mrb[0].mxu0
        %1877 = vmatprep.mubr.f32.mxu0 0.0
        %1878 = vmatmul.mubr.f32.gmra.mrb[0].mxu0 %v1752
        %v1879 = vpop.f32.mrb[0].mxu0
        %v1880 = vadd.f32 0.0, %v1879
        %v1881 = vpop.f32.mrb[0].mxu0
        %1882 = vmatprep.mubr.f32.mxu0 0.0
        %1883 = vmatmul.mubr.f32.gmra.mrb[0].mxu0 %v1755
        %v1884 = vpop.f32.mrb[0].mxu0
        %v1885 = vadd.f32 0.0, %v1884
        %v1886 = vpop.f32.mrb[0].mxu0
        %1887 = vmatprep.mubr.f32.mxu0 0.0
        %1888 = vmatmul.mubr.f32.gmra.mrb[0].mxu0 %v1758
        %v1889 = vpop.f32.mrb[0].mxu0
        %v1890 = vadd.f32 0.0, %v1889
        %v1891 = vpop.f32.mrb[0].mxu0
        %1892 = vmatprep.mubr.f32.mxu0 0.0
        %1893 = vmatmul.mubr.f32.gmra.mrb[0].mxu0 %v1761
        %v1894 = vpop.f32.mrb[0].mxu0
        %v1895 = vadd.f32 0.0, %v1894
        %v1896 = vpop.f32.mrb[0].mxu0
        %1897 = vmatprep.mubr.f32.mxu0 0.0
        %1898 = vmatmul.mubr.f32.gmra.mrb[0].mxu0 %v1764
        %v1899 = vpop.f32.mrb[0].mxu0
        %v1900 = vadd.f32 0.0, %v1899
        %v1901 = vpop.f32.mrb[0].mxu0
        %1902 = vmatprep.mubr.f32.mxu0 0.0
        %1903 = vmatmul.mubr.f32.gmra.mrb[0].mxu0 %v1767
        %v1904 = vpop.f32.mrb[0].mxu0
        %v1905 = vadd.f32 0.0, %v1904
        %v1906 = vpop.f32.mrb[0].mxu0
        %1907 = vmatprep.mubr.f32.mxu0 0.0
        %1908 = vmatmul.mubr.f32.gmra.mrb[0].mxu0 %v1770
        %v1909 = vpop.f32.mrb[0].mxu0
        %v1910 = vadd.f32 0.0, %v1909
        %v1911 = vpop.f32.mrb[0].mxu0
        %1912 = vmatprep.mubr.f32.mxu0 0.0
        %1913 = vmatmul.mubr.f32.gmra.mrb[0].mxu0 %v1773
        %v1914 = vpop.f32.mrb[0].mxu0
        %v1915 = vadd.f32 0.0, %v1914
        %v1916 = vpop.f32.mrb[0].mxu0
        %1917 = vmatprep.mubr.f32.mxu0 0.0
        %1918 = vmatmul.mubr.f32.gmra.mrb[0].mxu0 %v1776
        %v1919 = vpop.f32.mrb[0].mxu0
        %v1920 = vadd.f32 0.0, %v1919
        %v1921 = vpop.f32.mrb[0].mxu0
        %1922 = vmatprep.mubr.f32.mxu0 0.0
        %1923 = vmatmul.mubr.f32.gmra.mrb[0].mxu0 %v1779
        %v1924 = vpop.f32.mrb[0].mxu0
        %v1925 = vadd.f32 0.0, %v1924
        %v1926 = vpop.f32.mrb[0].mxu0
        %1927 = vmatprep.mubr.f32.mxu0 0.0
        %1928 = vmatmul.mubr.f32.gmra.mrb[0].mxu0 %v1782
        %v1929 = vpop.f32.mrb[0].mxu0
        %v1930 = vadd.f32 0.0, %v1929
        %v1931 = vpop.f32.mrb[0].mxu0
        %1932 = vdwg.mxu0
        %1949 = vrot.lane.b32.xlu0 %v1855, 32
        %v1950 = vpop.permute.xlu0 %1949
        %1951 = vrot.lane.b32.xlu0 %v1860, 32
        %v1952 = vpop.permute.xlu0 %1951
        %1953 = vrot.lane.b32.xlu0 %v1865, 32
        %v1954 = vpop.permute.xlu0 %1953
        %1955 = vrot.lane.b32.xlu0 %v1870, 32
        %v1956 = vpop.permute.xlu0 %1955
        %1957 = vrot.lane.b32.xlu0 %v1875, 32
        %v1958 = vpop.permute.xlu0 %1957
        %1959 = vrot.lane.b32.xlu0 %v1880, 32
        %v1960 = vpop.permute.xlu0 %1959
        %1961 = vrot.lane.b32.xlu0 %v1885, 32
        %v1962 = vpop.permute.xlu0 %1961
        %1963 = vrot.lane.b32.xlu0 %v1890, 32
        %v1964 = vpop.permute.xlu0 %1963
        %1965 = vrot.lane.b32.xlu0 %v1895, 32
        %v1966 = vpop.permute.xlu0 %1965
        %1967 = vrot.lane.b32.xlu0 %v1900, 32
        %v1968 = vpop.permute.xlu0 %1967
        %1969 = vrot.lane.b32.xlu0 %v1905, 32
        %v1970 = vpop.permute.xlu0 %1969
        %1971 = vrot.lane.b32.xlu0 %v1910, 32
        %v1972 = vpop.permute.xlu0 %1971
        %1973 = vrot.lane.b32.xlu0 %v1915, 32
        %v1974 = vpop.permute.xlu0 %1973
        %1975 = vrot.lane.b32.xlu0 %v1920, 32
        %v1976 = vpop.permute.xlu0 %1975
        %1977 = vrot.lane.b32.xlu0 %v1925, 32
        %v1978 = vpop.permute.xlu0 %1977
        %1979 = vrot.lane.b32.xlu0 %v1930, 32
        %v1980 = vpop.permute.xlu0 %1979
        %v1997 = vmul.f32 %v932, %v1950
        %v1998 = vmul.f32 %v937, %v1952
        %v1999 = vmul.f32 %v942, %v1954
        %v2000 = vmul.f32 %v947, %v1956
        %v2001 = vmul.f32 %v952, %v1958
        %v2002 = vmul.f32 %v957, %v1960
        %v2003 = vmul.f32 %v962, %v1962
        %v2004 = vmul.f32 %v967, %v1964
        %v2005 = vmul.f32 %v972, %v1966
        %v2006 = vmul.f32 %v977, %v1968
        %v2007 = vmul.f32 %v982, %v1970
        %v2008 = vmul.f32 %v987, %v1972
        %v2009 = vmul.f32 %v992, %v1974
        %v2010 = vmul.f32 %v997, %v1976
        %v2011 = vmul.f32 %v1002, %v1978
        %v2012 = vmul.f32 %v1007, %v1980
        %2029 = vrot.lane.b32.xlu0 %v1997, 96
        %v2030 = vpop.permute.xlu0 %2029
        %2031 = vrot.lane.b32.xlu0 %v1998, 96
        %v2032 = vpop.permute.xlu0 %2031
        %2033 = vrot.lane.b32.xlu0 %v1999, 96
        %v2034 = vpop.permute.xlu0 %2033
        %2035 = vrot.lane.b32.xlu0 %v2000, 96
        %v2036 = vpop.permute.xlu0 %2035
        %2037 = vrot.lane.b32.xlu0 %v2001, 96
        %v2038 = vpop.permute.xlu0 %2037
        %2039 = vrot.lane.b32.xlu0 %v2002, 96
        %v2040 = vpop.permute.xlu0 %2039
        %2041 = vrot.lane.b32.xlu0 %v2003, 96
        %v2042 = vpop.permute.xlu0 %2041
        %2043 = vrot.lane.b32.xlu0 %v2004, 96
        %v2044 = vpop.permute.xlu0 %2043
        %2045 = vrot.lane.b32.xlu0 %v2005, 96
        %v2046 = vpop.permute.xlu0 %2045
        %2047 = vrot.lane.b32.xlu0 %v2006, 96
        %v2048 = vpop.permute.xlu0 %2047
        %2049 = vrot.lane.b32.xlu0 %v2007, 96
        %v2050 = vpop.permute.xlu0 %2049
        %2051 = vrot.lane.b32.xlu0 %v2008, 96
        %v2052 = vpop.permute.xlu0 %2051
        %2053 = vrot.lane.b32.xlu0 %v2009, 96
        %v2054 = vpop.permute.xlu0 %2053
        %2055 = vrot.lane.b32.xlu0 %v2010, 96
        %v2056 = vpop.permute.xlu0 %2055
        %2057 = vrot.lane.b32.xlu0 %v2011, 96
        %v2058 = vpop.permute.xlu0 %2057
        %2059 = vrot.lane.b32.xlu0 %v2012, 96
        %v2060 = vpop.permute.xlu0 %2059
        %2077 = vrot.lane.b32.xlu0 %v1704, 32
        %v2078 = vpop.permute.xlu0 %2077
        %2079 = vrot.lane.b32.xlu0 %v1706, 32
        %v2080 = vpop.permute.xlu0 %2079
        %2081 = vrot.lane.b32.xlu0 %v1708, 32
        %v2082 = vpop.permute.xlu0 %2081
        %2083 = vrot.lane.b32.xlu0 %v1710, 32
        %v2084 = vpop.permute.xlu0 %2083
        %2085 = vrot.lane.b32.xlu0 %v1712, 32
        %v2086 = vpop.permute.xlu0 %2085
        %2087 = vrot.lane.b32.xlu0 %v1714, 32
        %v2088 = vpop.permute.xlu0 %2087
        %2089 = vrot.lane.b32.xlu0 %v1716, 32
        %v2090 = vpop.permute.xlu0 %2089
        %2091 = vrot.lane.b32.xlu0 %v1718, 32
        %v2092 = vpop.permute.xlu0 %2091
        %2093 = vrot.lane.b32.xlu0 %v1720, 32
        %v2094 = vpop.permute.xlu0 %2093
        %2095 = vrot.lane.b32.xlu0 %v1722, 32
        %v2096 = vpop.permute.xlu0 %2095
        %2097 = vrot.lane.b32.xlu0 %v1724, 32
        %v2098 = vpop.permute.xlu0 %2097
        %2099 = vrot.lane.b32.xlu0 %v1726, 32
        %v2100 = vpop.permute.xlu0 %2099
        %2101 = vrot.lane.b32.xlu0 %v1728, 32
        %v2102 = vpop.permute.xlu0 %2101
        %2103 = vrot.lane.b32.xlu0 %v1730, 32
        %v2104 = vpop.permute.xlu0 %2103
        %2105 = vrot.lane.b32.xlu0 %v1732, 32
        %v2106 = vpop.permute.xlu0 %2105
        %2107 = vrot.lane.b32.xlu0 %v1734, 32
        %v2108 = vpop.permute.xlu0 %2107
        %v2125 = vsel %vm1460, %v2030, %v2078
        %v2126 = vsel %vm1460, %v2032, %v2080
        %v2127 = vsel %vm1460, %v2034, %v2082
        %v2128 = vsel %vm1460, %v2036, %v2084
        %v2129 = vsel %vm1460, %v2038, %v2086
        %v2130 = vsel %vm1460, %v2040, %v2088
        %v2131 = vsel %vm1460, %v2042, %v2090
        %v2132 = vsel %vm1460, %v2044, %v2092
        %v2133 = vsel %vm1460, %v2046, %v2094
        %v2134 = vsel %vm1460, %v2048, %v2096
        %v2135 = vsel %vm1460, %v2050, %v2098
        %v2136 = vsel %vm1460, %v2052, %v2100
        %v2137 = vsel %vm1460, %v2054, %v2102
        %v2138 = vsel %vm1460, %v2056, %v2104
        %v2139 = vsel %vm1460, %v2058, %v2106
        %v2140 = vsel %vm1460, %v2060, %v2108
        %v2141 = vld [vmem:[#allocation4] sm:$0xff]
        %v2142 = vld [vmem:[#allocation4 + $0x8] sm:$0xff]
        %v2143 = vld [vmem:[#allocation4 + $0x10] sm:$0xff]
        %2144 = vmatprep.subr.mxu0 0.0
        %2145 = vmatpush1.msra.mxu0 %v2125
        %2146 = vmatprep.subr.mxu0 0.0
        %2147 = vmatpush1.msra.mxu0 %v2126
        %2148 = vmatprep.subr.mxu0 0.0
        %2149 = vmatpush1.msra.mxu0 %v2127
        %2150 = vmatprep.subr.mxu0 0.0
        %2151 = vmatpush1.msra.mxu0 %v2128
        %2152 = vmatprep.subr.mxu0 0.0
        %2153 = vmatpush1.msra.mxu0 %v2129
        %2154 = vmatprep.subr.mxu0 0.0
        %2155 = vmatpush1.msra.mxu0 %v2130
        %2156 = vmatprep.subr.mxu0 0.0
        %2157 = vmatpush1.msra.mxu0 %v2131
        %2158 = vmatprep.subr.mxu0 0.0
        %2159 = vmatpush1.msra.mxu0 %v2132
        %2160 = vmatprep.subr.mxu0 0.0
        %2161 = vmatpush1.msra.mxu0 %v2133
        %2162 = vmatprep.subr.mxu0 0.0
        %2163 = vmatpush1.msra.mxu0 %v2134
        %2164 = vmatprep.subr.mxu0 0.0
        %2165 = vmatpush1.msra.mxu0 %v2135
        %2166 = vmatprep.subr.mxu0 0.0
        %2167 = vmatpush1.msra.mxu0 %v2136
        %2168 = vmatprep.subr.mxu0 0.0
        %2169 = vmatpush1.msra.mxu0 %v2137
        %2170 = vmatprep.subr.mxu0 0.0
        %2171 = vmatpush1.msra.mxu0 %v2138
        %2172 = vmatprep.subr.mxu0 0.0
        %2173 = vmatpush1.msra.mxu0 %v2139
        %2174 = vmatprep.subr.mxu0 0.0
        %2175 = vmatpush1.msra.mxu0 %v2140
        %2176 = vmatprep.subr.mxu0 0.0
        %2177 = vmatpush1.msra.mxu0 0.0
        %2178 = vmatprep.subr.mxu0 0.0
        %2179 = vmatpush1.msra.mxu0 0.0
        %2180 = vmatprep.subr.mxu0 0.0
        %2181 = vmatpush1.msra.mxu0 0.0
        %2182 = vmatprep.subr.mxu0 0.0
        %2183 = vmatpush1.msra.mxu0 0.0
        %2184 = vmatprep.subr.mxu0 0.0
        %2185 = vmatpush1.msra.mxu0 0.0
        %2186 = vmatprep.subr.mxu0 0.0
        %2187 = vmatpush1.msra.mxu0 0.0
        %2188 = vmatprep.subr.mxu0 0.0
        %2189 = vmatpush1.msra.mxu0 0.0
        %2190 = vmatprep.subr.mxu0 0.0
        %2191 = vmatpush1.msra.mxu0 0.0
        %2192 = vmatprep.subr.mxu0 0.0
        %2193 = vmatpush1.msra.mxu0 0.0
        %2194 = vmatprep.subr.mxu0 0.0
        %2195 = vmatpush1.msra.mxu0 0.0
        %2196 = vmatprep.subr.mxu0 0.0
        %2197 = vmatpush1.msra.mxu0 0.0
        %2198 = vmatprep.subr.mxu0 0.0
        %2199 = vmatpush1.msra.mxu0 0.0
        %2200 = vmatprep.subr.mxu0 0.0
        %2201 = vmatpush1.msra.mxu0 0.0
        %2202 = vmatprep.subr.mxu0 0.0
        %2203 = vmatpush1.msra.mxu0 0.0
        %2204 = vmatprep.subr.mxu0 0.0
        %2205 = vmatpush1.msra.mxu0 0.0
        %2206 = vmatprep.subr.mxu0 0.0
        %2207 = vmatpush1.msra.mxu0 0.0
        %2208 = vmatprep.mubr.f32.mxu0 0.0
        %2209 = vmatmul.mubr.f32.gmra.mrb[0].mxu0 %v810
        %v2210 = vpop.f32.mrb[0].mxu0
        %v2211 = vadd.f32 0.0, %v2210
        %v2212 = vpop.f32.mrb[0].mxu0
        %2213 = vmatprep.mubr.f32.mxu0 0.0
        %2214 = vmatmul.mubr.f32.gmra.mrb[0].mxu0 %v811
        %v2215 = vpop.f32.mrb[0].mxu0
        %v2216 = vadd.f32 0.0, %v2215
        %v2217 = vpop.f32.mrb[0].mxu0
        %2218 = vmatprep.mubr.f32.mxu0 0.0
        %2219 = vmatmul.mubr.f32.gmra.mrb[0].mxu0 %v812
        %v2220 = vpop.f32.mrb[0].mxu0
        %v2221 = vadd.f32 0.0, %v2220
        %v2222 = vpop.f32.mrb[0].mxu0
        %2223 = vdwg.mxu0
        %v2224 = vadd.f32 %v2141, %v2211
        %v2225 = vadd.f32 %v2142, %v2216
        %v2226 = vadd.f32 %v2143, %v2221
        %vm2227 = vcmask 293888
        %2228 = vst.msk [vmem:[#allocation4] sm:$0xff] %vm2227, %v2224
        %2229 = vst.msk [vmem:[#allocation4 + $0x8] sm:$0xff] %vm2227, %v2225
        %2230 = vst.msk [vmem:[#allocation4 + $0x10] sm:$0xff] %vm2227, %v2226
        %p2231 = scmp.eq.s32.totalorder %s25, 1
        // Predicated region
        $region69: #{tpu_custom_call.1} parent=63 // pred_check
          %p2232 = pneg %p2231
        $region70: #{tpu_custom_call.1} parent=63 // pred_check_branch
          %2234 = sbr.rel (%p2232) target = $region72
        $region71: #{tpu_custom_call.1} parent=63 // pred_region
          %v2235 = vld [vmem:[#allocation4] sm:$0xff]
          %v2236 = vld [vmem:[#allocation4 + $0x8] sm:$0xff]
          %v2237 = vld [vmem:[#allocation4 + $0x10] sm:$0xff]
          %v2238 = vld [vmem:[%s10] sm:$0xf]
          %2242 = vrot.lane.b32.xlu0 %v2235, 96
          %v2243 = vpop.permute.xlu0 %2242
          %2244 = vrot.lane.b32.xlu0 %v2236, 96
          %v2245 = vpop.permute.xlu0 %2244
          %2246 = vrot.lane.b32.xlu0 %v2237, 96
          %v2247 = vpop.permute.xlu0 %2246
          %v2248 = vsel %vm1654, %v2243, 0
          %v2250 = vsel %vm1654, %v2245, 0
          %v2252 = vsel %vm1654, %v2247, 0
          %v2255 = vsel %vm1784, %v2238, 0
          %2257 = vmatprep.subr.mxu0 0.0
          %2258 = vmatpush1.msra.mxu0 %v2255
          %2259 = vmatprep.subr.mxu0 0.0
          %2260 = vmatpush1.msra.mxu0 0.0
          %2261 = vmatprep.subr.mxu0 0.0
          %2262 = vmatpush1.msra.mxu0 0.0
          %2263 = vmatprep.subr.mxu0 0.0
          %2264 = vmatpush1.msra.mxu0 0.0
          %2265 = vmatprep.subr.mxu0 0.0
          %2266 = vmatpush1.msra.mxu0 0.0
          %2267 = vmatprep.subr.mxu0 0.0
          %2268 = vmatpush1.msra.mxu0 0.0
          %2269 = vmatprep.subr.mxu0 0.0
          %2270 = vmatpush1.msra.mxu0 0.0
          %2271 = vmatprep.subr.mxu0 0.0
          %2272 = vmatpush1.msra.mxu0 0.0
          %2273 = vmatprep.subr.mxu0 0.0
          %2274 = vmatpush1.msra.mxu0 0.0
          %2275 = vmatprep.subr.mxu0 0.0
          %2276 = vmatpush1.msra.mxu0 0.0
          %2277 = vmatprep.subr.mxu0 0.0
          %2278 = vmatpush1.msra.mxu0 0.0
          %2279 = vmatprep.subr.mxu0 0.0
          %2280 = vmatpush1.msra.mxu0 0.0
          %2281 = vmatprep.subr.mxu0 0.0
          %2282 = vmatpush1.msra.mxu0 0.0
          %2283 = vmatprep.subr.mxu0 0.0
          %2284 = vmatpush1.msra.mxu0 0.0
          %2285 = vmatprep.subr.mxu0 0.0
          %2286 = vmatpush1.msra.mxu0 0.0
          %2287 = vmatprep.subr.mxu0 0.0
          %2288 = vmatpush1.msra.mxu0 0.0
          %2289 = vmatprep.subr.mxu0 0.0
          %2290 = vmatpush1.msra.mxu0 0.0
          %2291 = vmatprep.subr.mxu0 0.0
          %2292 = vmatpush1.msra.mxu0 0.0
          %2293 = vmatprep.subr.mxu0 0.0
          %2294 = vmatpush1.msra.mxu0 0.0
          %2295 = vmatprep.subr.mxu0 0.0
          %2296 = vmatpush1.msra.mxu0 0.0
          %2297 = vmatprep.subr.mxu0 0.0
          %2298 = vmatpush1.msra.mxu0 0.0
          %2299 = vmatprep.subr.mxu0 0.0
          %2300 = vmatpush1.msra.mxu0 0.0
          %2301 = vmatprep.subr.mxu0 0.0
          %2302 = vmatpush1.msra.mxu0 0.0
          %2303 = vmatprep.subr.mxu0 0.0
          %2304 = vmatpush1.msra.mxu0 0.0
          %2305 = vmatprep.subr.mxu0 0.0
          %2306 = vmatpush1.msra.mxu0 0.0
          %2307 = vmatprep.subr.mxu0 0.0
          %2308 = vmatpush1.msra.mxu0 0.0
          %2309 = vmatprep.subr.mxu0 0.0
          %2310 = vmatpush1.msra.mxu0 0.0
          %2311 = vmatprep.subr.mxu0 0.0
          %2312 = vmatpush1.msra.mxu0 0.0
          %2313 = vmatprep.subr.mxu0 0.0
          %2314 = vmatpush1.msra.mxu0 0.0
          %2315 = vmatprep.subr.mxu0 0.0
          %2316 = vmatpush1.msra.mxu0 0.0
          %2317 = vmatprep.subr.mxu0 0.0
          %2318 = vmatpush1.msra.mxu0 0.0
          %2319 = vmatprep.subr.mxu0 0.0
          %2320 = vmatpush1.msra.mxu0 0.0
          %2321 = vmatprep.mubr.f32.mxu0 0.0
          %2322 = vmatmul.mubr.f32.gmra.mrb[0].mxu0 %v2248
          %v2323 = vpop.f32.mrb[0].mxu0
          %v2324 = vadd.f32 1e-06, %v2323
          %v2325 = vpop.f32.mrb[0].mxu0
          %2326 = vmatprep.mubr.f32.mxu0 0.0
          %2327 = vmatmul.mubr.f32.gmra.mrb[0].mxu0 %v2250
          %v2328 = vpop.f32.mrb[0].mxu0
          %v2329 = vadd.f32 1e-06, %v2328
          %v2330 = vpop.f32.mrb[0].mxu0
          %2331 = vmatprep.mubr.f32.mxu0 0.0
          %2332 = vmatmul.mubr.f32.gmra.mrb[0].mxu0 %v2252
          %v2333 = vpop.f32.mrb[0].mxu0
          %v2334 = vadd.f32 1e-06, %v2333
          %v2335 = vpop.f32.mrb[0].mxu0
          %2336 = vdwg.mxu0
          %v2337 = vrcp.pop %v2324
          %v2338 = vmul.f32 %v2235, %v2337
          %v2339 = vrcp.pop %v2329
          %v2340 = vmul.f32 %v2236, %v2339
          %v2341 = vrcp.pop %v2334
          %v2342 = vmul.f32 %v2237, %v2341
          %2343 = vst.msk [vmem:[#allocation5] sm:$0xff] %vm1460, %v2338
          %2344 = vst.msk [vmem:[#allocation5 + $0x8] sm:$0xff] %vm1460, %v2340
          %2345 = vst.msk [vmem:[#allocation5 + $0x10] sm:$0xff] %vm1460, %v2342
        $region72: #{tpu_custom_call.1} parent=63 // pred_fallthru
          _
        %s2346 = smul.u32 16, %s25
        %p2347 = scmp.lt.s32.totalorder %s2346, 31
        %s2348 = scalar_select %p2347, %s2346, 31
        %s2349 = smul.addr %s2348, 8
        %s2350 = scalar_lea.vmem %s12, %s2349
        // Predicated region
        $region73: #{tpu_custom_call.1} parent=63 // pred_check
          %p2351 = pneg %p289
        $region74: #{tpu_custom_call.1} parent=63 // pred_check_branch
          %2353 = sbr.rel (%p2351) target = $region76
        $region75: #{tpu_custom_call.1} parent=63 // pred_region
          %s2355 = ssub.s32 384, 384
          %2356 = vsyncadd [#allocation6], %s2355
          %s2357 = sshll.u32 [#allocation5], 4
          %s2358 = int_to_ptr.vmem [resolvable:$true] %s2357
          %2363 = dma.vmem_to_hbm [thread:$0]  %s2358, 384, %s11, [#allocation6], 128, 128, 8
        $region76: #{tpu_custom_call.1} parent=63 // pred_fallthru
          _
        // Predicated region
        $region77: #{tpu_custom_call.1} parent=63 // pred_check
          %p2364 = pneg %p315
        $region78: #{tpu_custom_call.1} parent=63 // pred_check_branch
          %2366 = sbr.rel (%p2364) target = $region80
        $region79: #{tpu_custom_call.1} parent=63 // pred_region
          %s2367 = smul.u32 16, %s25
        $region80: #{tpu_custom_call.1} parent=63 // pred_fallthru
          _
        // Predicated region
        $region81: #{tpu_custom_call.1} parent=63 // pred_check
          %p2368 = pneg %p289
        $region82: #{tpu_custom_call.1} parent=63 // pred_check_branch
          %2370 = sbr.rel (%p2368) target = $region84
        $region83: #{tpu_custom_call.1} parent=63 // pred_region
          %2371 = dma.done [#allocation6], 384
        $region84: #{tpu_custom_call.1} parent=63 // pred_fallthru
          _
      $region64: #{tpu_custom_call.1} parent=5 // pred_fallthru
        _
      %p2372 = scmp.le.s32.totalorder 2, %s20
      // Predicated region
      $region85: #{tpu_custom_call.1} parent=5 // pred_check
        %p2373 = pneg %p2372
      $region86: #{tpu_custom_call.1} parent=5 // pred_check_branch
        %2375 = sbr.rel (%p2373) target = $region88
      $region87: #{tpu_custom_call.1} parent=5 // pred_region
        %s2376 = ssub.s32 %s20, 2
        // Predicated region
        $region89: #{tpu_custom_call.1} parent=87 // pred_check
          %p2377 = pneg %p321
        $region90: #{tpu_custom_call.1} parent=87 // pred_check_branch
          %2379 = sbr.rel (%p2377) target = $region92
        $region91: #{tpu_custom_call.1} parent=87 // pred_region
          %s2380 = smul.u32 16, %s26
          %p2381 = scmp.lt.s32.totalorder %s2380, 31
          %s2382 = scalar_select %p2381, %s2380, 31
          %s2383 = smul.addr %s2382, 8
          %s2384 = scalar_lea.vmem %s12, %s2383
        $region92: #{tpu_custom_call.1} parent=87 // pred_fallthru
          _
      $region88: #{tpu_custom_call.1} parent=5 // pred_fallthru
        _
    $region6: #{tpu_custom_call.1} parent=1 // loop_footer
      %s24 = sadd.s32 1, %s20
    $region7: #{tpu_custom_call.1} parent=1 // loop_footer_branch
      %19 = sbr.rel target = $region3
    $region8: #{tpu_custom_call.1} parent=1 // loop_exit
      _
    %2385 = vsyncpa [#allocation6], 1
    %s2386 = scalar_lea.sflag [#allocation6], 1
    %2387 = vsyncpa %s2386, 1

</llo_original>
